<compile_context>
chip_gen: v7x
topology: tpu7x:2x2x1
jax: 0.10.0
libtpu: 0.0.40
codegen_flags: <defaults>
</compile_context>

<pallas_src>
import functools

import jax
import jax.numpy as jnp
from jax.experimental import pallas as pl
from jax.experimental.pallas import tpu as pltpu


def _round_up(x, m):
    return (x + m - 1) // m * m


def _pick_tile_n(n, tile_n):
    """Row-tile picker: multiple of 16, >= ~4 grid steps on large clouds
    (v7x 2-TC sharding + double buffering), never larger than round_up(n, 16).
    """
    tile_n = max(16, _round_up(int(tile_n), 16))
    target = max(1024, _round_up(pl.cdiv(n, 4), 16))
    return max(16, min(tile_n, target, _round_up(n, 16)))


# ----------------------------------------------------------------------------
# Kernel bodies
# ----------------------------------------------------------------------------
def _mlp_tile(x_ref, w1_ref, b1_ref, w2_ref, b2_ref):
    """relu(x @ w1 + b1) @ w2 + b2 for one (tile_n, C) tile; f32 result."""
    x = x_ref[...].astype(jnp.bfloat16)                        # (TN, C)
    h = jnp.dot(x, w1_ref[...], preferred_element_type=jnp.float32)
    h = jnp.maximum(h + b1_ref[...], 0.0)                      # (TN, H) f32
    o = jnp.dot(h.astype(jnp.bfloat16), w2_ref[...],
                preferred_element_type=jnp.float32)
    return o + b2_ref[...]                                     # (TN, K) f32


def _mlp_kernel(x_ref, w1_ref, b1_ref, w2_ref, b2_ref, logits_ref):
    # Inference-only path (no labels).  Rows past n in the edge block are
    # garbage but their stores are clipped by the partial output block.
    logits_ref[...] = _mlp_tile(x_ref, w1_ref, b1_ref, w2_ref,
                                b2_ref).astype(logits_ref.dtype)


def _fused_mlp_ce_kernel(x_ref, lbl_ref, w1_ref, b1_ref, w2_ref, b2_ref,
                         *out_refs, n_rows, emit_logits):
    # Backbone + criteria fused: the logits tile stays in VMEM for the CE math.
    o = _mlp_tile(x_ref, w1_ref, b1_ref, w2_ref, b2_ref)       # (TN, K) f32
    if emit_logits:
        logits_ref, part_ref = out_refs
        logits_ref[...] = o.astype(logits_ref.dtype)
    else:
        (part_ref,) = out_refs                                 # training path

    tile_n = o.shape[0]
    labels = lbl_ref[...]                                      # (TN, 1) int32
    # Row-index validity mask: the edge block reads past n (garbage rows and
    # garbage labels), so "in bounds" must come from the global row index,
    # not from padded labels.  ignore_index=-1 handled by labels >= 0.
    row = (pl.program_id(0) * tile_n
           + jax.lax.broadcasted_iota(jnp.int32, (tile_n, 1), 0))
    valid = (row < n_rows) & (labels >= 0)                     # (TN, 1) bool

    m = jnp.max(o, axis=-1, keepdims=True)
    lse = jnp.log(jnp.sum(jnp.exp(o - m), axis=-1, keepdims=True)) + m
    onehot = jax.lax.broadcasted_iota(jnp.int32, o.shape, 1) == labels
    tgt = jnp.sum(jnp.where(onehot, o, 0.0), axis=-1, keepdims=True)
    per_row = jnp.where(valid, lse - tgt, 0.0)                 # (TN, 1)

    loss_sum = jnp.sum(per_row)
    cnt = jnp.sum(valid.astype(jnp.float32))

    # Single lane-dense per-program partial block: loss in sublane 0,
    # valid count in sublane 1.  Reduced in the wrapper, so the grid axis
    # stays "parallel" (megacore / v7x friendly) and stores are unmasked.
    sub = jax.lax.broadcasted_iota(jnp.int32, part_ref.shape, 1)  # (1,8,128)
    part_ref[...] = jnp.where(sub == 0, loss_sum,
                              jnp.where(sub == 1, cnt, 0.0))


# ----------------------------------------------------------------------------
# Wrappers
# ----------------------------------------------------------------------------
_COMPILER_PARAMS = pltpu.CompilerParams(
    dimension_semantics=("parallel",),
    vmem_limit_bytes=48 * 1024 * 1024,   # > 32 MiB default, < v7x 64 MiB phys.
)


def mlp_head(feat, params, *, tile_n=32768, logits_dtype=jnp.bfloat16):
    """seg_logits only (inference path, no labels)."""
    w1, b1, w2, b2 = params
    n, c = feat.shape
    h, k = w1.shape[1], w2.shape[1]
    tile_n = _pick_tile_n(n, tile_n)
    num_tiles = pl.cdiv(n, tile_n)

    cost = pl.CostEstimate(
        flops=2 * n * (c * h + h * k),
        transcendentals=0,
        bytes_accessed=n * c * feat.dtype.itemsize
        + n * k * jnp.dtype(logits_dtype).itemsize
        + (c * h + h * k) * 2 + (h + k) * 4)

    logits = pl.pallas_call(
        _mlp_kernel,
        out_shape=jax.ShapeDtypeStruct((n, k), logits_dtype),
        grid_spec=pltpu.PrefetchScalarGridSpec(
            num_scalar_prefetch=0,
            grid=(num_tiles,),
            in_specs=[
                pl.BlockSpec((tile_n, c), lambda i: (i, 0)),
                pl.BlockSpec((c, h), lambda i: (0, 0)),
                pl.BlockSpec((1, h), lambda i: (0, 0)),
                pl.BlockSpec((h, k), lambda i: (0, 0)),
                pl.BlockSpec((1, k), lambda i: (0, 0)),
            ],
            out_specs=pl.BlockSpec((tile_n, k), lambda i: (i, 0)),
        ),
        compiler_params=_COMPILER_PARAMS,
        cost_estimate=cost,
    )(feat, w1, b1, w2, b2)
    return logits


def mlp_head_with_ce(feat, labels, params, *, tile_n=32768, emit_logits=True,
                     logits_dtype=jnp.bfloat16):
    """Fused backbone + criteria.  Returns (seg_logits | None, mean loss)."""
    w1, b1, w2, b2 = params
    n, c = feat.shape
    h, k = w1.shape[1], w2.shape[1]
    tile_n = _pick_tile_n(n, tile_n)
    num_tiles = pl.cdiv(n, tile_n)
    labels2d = labels.reshape(n, 1).astype(jnp.int32)

    out_shapes, out_specs = [], []
    if emit_logits:
        out_shapes.append(jax.ShapeDtypeStruct((n, k), logits_dtype))
        out_specs.append(pl.BlockSpec((tile_n, k), lambda i: (i, 0)))
    # merged loss-sum / valid-count partials (sublane 0 / sublane 1)
    out_shapes.append(jax.ShapeDtypeStruct((num_tiles, 8, 128), jnp.float32))
    out_specs.append(pl.BlockSpec((1, 8, 128), lambda i: (i, 0, 0)))

    cost = pl.CostEstimate(
        flops=2 * n * (c * h + h * k),
        transcendentals=n * (k + 1),
        bytes_accessed=n * c * feat.dtype.itemsize + n * 4
        + (c * h + h * k) * 2 + (h + k) * 4
        + (n * k * jnp.dtype(logits_dtype).itemsize if emit_logits else 0)
        + num_tiles * 8 * 128 * 4)

    outs = pl.pallas_call(
        functools.partial(_fused_mlp_ce_kernel, n_rows=n,
                          emit_logits=emit_logits),
        out_shape=tuple(out_shapes),
        grid_spec=pltpu.PrefetchScalarGridSpec(
            num_scalar_prefetch=0,
            grid=(num_tiles,),
            in_specs=[
                pl.BlockSpec((tile_n, c), lambda i: (i, 0)),
                pl.BlockSpec((tile_n, 1), lambda i: (i, 0)),
                pl.BlockSpec((c, h), lambda i: (0, 0)),
                pl.BlockSpec((1, h), lambda i: (0, 0)),
                pl.BlockSpec((h, k), lambda i: (0, 0)),
                pl.BlockSpec((1, k), lambda i: (0, 0)),
            ],
            out_specs=tuple(out_specs),
        ),
        compiler_params=_COMPILER_PARAMS,
        cost_estimate=cost,
    )(feat, labels2d, w1, b1, w2, b2)

    part = outs[-1]
    total_loss = jnp.sum(part[:, 0, 0])
    valid_count = jnp.sum(part[:, 1, 0])
    # torch CE(ignore_index=-1, 'mean') would give NaN when nothing is valid;
    # we deliberately return 0 instead (guarded divide).
    loss = total_loss / jnp.maximum(valid_count, 1.0)
    if emit_logits:
        return outs[0], loss
    return None, loss


# ----------------------------------------------------------------------------
# DefaultSegmentor wrapper (mirrors the PyTorch forward control flow)
# ----------------------------------------------------------------------------
class DefaultSegmentor:
    def __init__(self, in_channels=16, hidden=32, num_classes=8, seed=0):
        k1, k2 = jax.random.split(jax.random.PRNGKey(seed))
        w1 = (jax.random.normal(k1, (in_channels, hidden), jnp.float32)
              * (1.0 / jnp.sqrt(in_channels)))
        w2 = (jax.random.normal(k2, (hidden, num_classes), jnp.float32)
              * (1.0 / jnp.sqrt(hidden)))
        # MXU operands stored as bf16 (f32 accumulation inside the kernel).
        self.params = (w1.astype(jnp.bfloat16),
                       jnp.zeros((1, hidden), jnp.float32),
                       w2.astype(jnp.bfloat16),
                       jnp.zeros((1, num_classes), jnp.float32))
        self.training = False

    def forward(self, input_dict):
        if "condition" in input_dict.keys():
            # condition is accepted but unused by this synthetic backbone
            input_dict["condition"] = input_dict["condition"][0]
        feat = input_dict["feat"]
        if self.training:
            # fused backbone + criteria; logits never written to HBM
            _, loss = mlp_head_with_ce(feat, input_dict["segment"],
                                       self.params, emit_logits=False)
            return dict(loss=loss)
        elif "segment" in input_dict.keys():
            seg_logits, loss = mlp_head_with_ce(feat, input_dict["segment"],
                                                self.params, emit_logits=True)
            return dict(loss=loss, seg_logits=seg_logits)
        else:
            seg_logits = mlp_head(feat, self.params)
            return dict(seg_logits=seg_logits)

    __call__ = forward


if __name__ == "__main__":
    # Ragged N exercises partial edge blocks + in-kernel row masking; a few
    # -1 labels exercise ignore_index handling.
    N, C, H, K = 300, 16, 32, 8

    key = jax.random.PRNGKey(0)
    kf, kl = jax.random.split(key)
    feat = jax.random.normal(kf, (N, C), jnp.float32)
    segment = jax.random.randint(kl, (N,), 0, K, jnp.int32)
    segment = segment.at[:7].set(-1)         # ignored points

    model = DefaultSegmentor(in_channels=C, hidden=H, num_classes=K, seed=0)
    input_dict = {"feat": feat, "segment": segment, "condition": ["ScanNet"]}

    # eval-with-labels path (loss + seg_logits)
    model.training = False
    out = model(dict(input_dict))
    seg_logits = jax.block_until_ready(out["seg_logits"])
    loss = jax.block_until_ready(out["loss"])
    assert seg_logits.shape == (N, K)
    assert loss.shape == ()

    # training path (loss only; logits never leave VMEM)
    model.training = True
    loss_tr = jax.block_until_ready(model(dict(input_dict))["loss"])

    # inference path (no labels)
    model.training = False
    out_inf = model({"feat": feat, "condition": ["ScanNet"]})
    jax.block_until_ready(out_inf["seg_logits"])

    # loose pure-JAX reference check (bf16 MXU operands + bf16 seg_logits
    # -> generous tolerance on logits; loss is computed from f32 logits).
    w1, b1, w2, b2 = model.params
    xr = feat.astype(jnp.bfloat16).astype(jnp.float32)
    hr = jnp.maximum(xr @ w1.astype(jnp.float32) + b1, 0.0)
    ref_logits = (hr.astype(jnp.bfloat16).astype(jnp.float32)
                  @ w2.astype(jnp.float32) + b2)
    valid = segment >= 0
    lse = jax.nn.logsumexp(ref_logits, axis=-1)
    tgt = jnp.take_along_axis(ref_logits,
                              jnp.maximum(segment, 0)[:, None], axis=-1)[:, 0]
    ref_loss = jnp.sum(jnp.where(valid, lse - tgt, 0.0)) / jnp.sum(valid)

    assert jnp.allclose(seg_logits.astype(jnp.float32), ref_logits,
                        atol=0.1, rtol=0.1)
    assert jnp.allclose(loss, ref_loss, atol=0.05, rtol=0.05)
    assert jnp.allclose(loss_tr, loss, atol=1e-5)
    assert bool(jnp.isfinite(loss))
    print("KERNEL_OK")
</pallas_src>

<mosaic_0001>
module attributes {stable_mosaic.version = 11 : i64} {
  func.func @_fused_mlp_ce_kernel(%arg0: i32, %arg1: memref<304x16xf32, #tpu.memory_space<vmem>>, %arg2: memref<304x1xi32, #tpu.memory_space<vmem>>, %arg3: memref<16x32xbf16, #tpu.memory_space<vmem>>, %arg4: memref<1x32xf32, #tpu.memory_space<vmem>>, %arg5: memref<32x8xbf16, #tpu.memory_space<vmem>>, %arg6: memref<1x8xf32, #tpu.memory_space<vmem>>, %arg7: memref<304x8xbf16, #tpu.memory_space<vmem>>, %arg8: memref<1x8x128xf32, #tpu.memory_space<vmem>>) attributes {dimension_semantics = [#tpu.dimension_semantics<parallel>], iteration_bounds = array<i64: 1>, scalar_prefetch = 0 : i64, scratch_operands = 0 : i64, tpu.core_type = #tpu.core_type<tc>, window_params = [{transform_indices = @transform_0, window_bounds = array<i64: 304, 16>}, {transform_indices = @transform_1, window_bounds = array<i64: 304, 1>}, {pipeline_mode = #tpu.pipeline_mode<synchronous>, transform_indices = @transform_2, window_bounds = array<i64: 16, 32>}, {pipeline_mode = #tpu.pipeline_mode<synchronous>, transform_indices = @transform_3, window_bounds = array<i64: 1, 32>}, {pipeline_mode = #tpu.pipeline_mode<synchronous>, transform_indices = @transform_4, window_bounds = array<i64: 32, 8>}, {pipeline_mode = #tpu.pipeline_mode<synchronous>, transform_indices = @transform_5, window_bounds = array<i64: 1, 8>}, {transform_indices = @transform_6, window_bounds = array<i64: 304, 8>}, {transform_indices = @transform_7, window_bounds = array<i64: 1, 8, 128>}]} {
    %c0 = arith.constant 0 : index
    %c0_0 = arith.constant 0 : index
    %0 = vector.load %arg1[%c0, %c0_0] : memref<304x16xf32, #tpu.memory_space<vmem>>, vector<304x16xf32>
    %1 = arith.truncf %0 : vector<304x16xf32> to vector<304x16xbf16>
    %c0_1 = arith.constant 0 : index
    %c0_2 = arith.constant 0 : index
    %2 = vector.load %arg3[%c0_1, %c0_2] : memref<16x32xbf16, #tpu.memory_space<vmem>>, vector<16x32xbf16>
    %cst = arith.constant dense<0.000000e+00> : vector<304x32xf32>
    %3 = tpu.matmul %1, %2, %cst {dimension_numbers = #tpu.dot_dimension_numbers<[1], [0], [0], [1], [0, 0, 1, 1], [], []>} : vector<304x16xbf16>, vector<16x32xbf16>, vector<304x32xf32> -> vector<304x32xf32>
    %c0_3 = arith.constant 0 : index
    %c0_4 = arith.constant 0 : index
    %4 = vector.load %arg4[%c0_3, %c0_4] : memref<1x32xf32, #tpu.memory_space<vmem>>, vector<1x32xf32>
    %5 = vector.broadcast %4 : vector<1x32xf32> to vector<304x32xf32>
    %6 = arith.addf %3, %5 : vector<304x32xf32>
    %cst_5 = arith.constant 0.000000e+00 : f32
    %7 = vector.broadcast %cst_5 : f32 to vector<304x32xf32>
    %8 = arith.maximumf %6, %7 : vector<304x32xf32>
    %9 = arith.truncf %8 : vector<304x32xf32> to vector<304x32xbf16>
    %c0_6 = arith.constant 0 : index
    %c0_7 = arith.constant 0 : index
    %10 = vector.load %arg5[%c0_6, %c0_7] : memref<32x8xbf16, #tpu.memory_space<vmem>>, vector<32x8xbf16>
    %cst_8 = arith.constant dense<0.000000e+00> : vector<304x8xf32>
    %11 = tpu.matmul %9, %10, %cst_8 {dimension_numbers = #tpu.dot_dimension_numbers<[1], [0], [0], [1], [0, 0, 1, 1], [], []>} : vector<304x32xbf16>, vector<32x8xbf16>, vector<304x8xf32> -> vector<304x8xf32>
    %c0_9 = arith.constant 0 : index
    %c0_10 = arith.constant 0 : index
    %12 = vector.load %arg6[%c0_9, %c0_10] : memref<1x8xf32, #tpu.memory_space<vmem>>, vector<1x8xf32>
    %13 = vector.broadcast %12 : vector<1x8xf32> to vector<304x8xf32>
    %14 = arith.addf %11, %13 : vector<304x8xf32>
    %15 = arith.truncf %14 : vector<304x8xf32> to vector<304x8xbf16>
    %c0_11 = arith.constant 0 : index
    %c0_12 = arith.constant 0 : index
    %16 = vector.load %arg7[%c0_11, %c0_12] : memref<304x8xbf16, #tpu.memory_space<vmem>>, vector<304x8xbf16>
    tpu.vector_store %arg7[%c0_11, %c0_12], %15 {strides = array<i32>} : memref<304x8xbf16, #tpu.memory_space<vmem>>, vector<304x8xbf16>,
    %c0_13 = arith.constant 0 : index
    %c0_14 = arith.constant 0 : index
    %17 = vector.load %arg2[%c0_13, %c0_14] : memref<304x1xi32, #tpu.memory_space<vmem>>, vector<304x1xi32>
    %c304_i32 = arith.constant 304 : i32
    %18 = arith.muli %arg0, %c304_i32 : i32
    %19 = tpu.iota {dimensions = array<i32: 0>} : vector<304x1xi32>
    %20 = vector.broadcast %18 : i32 to vector<304x1xi32>
    %21 = arith.addi %20, %19 : vector<304x1xi32>
    %c300_i32 = arith.constant 300 : i32
    %22 = vector.broadcast %c300_i32 : i32 to vector<304x1xi32>
    %23 = arith.cmpi slt, %21, %22 : vector<304x1xi32>
    %c0_i32 = arith.constant 0 : i32
    %24 = vector.broadcast %c0_i32 : i32 to vector<304x1xi32>
    %25 = arith.cmpi sge, %17, %24 : vector<304x1xi32>
    %26 = arith.andi %23, %25 : vector<304x1xi1>
    %cst_15 = arith.constant dense<0xFF800000> : vector<304xf32>
    %27 = vector.multi_reduction <maximumf>, %14, %cst_15 [1] : vector<304x8xf32> to vector<304xf32>
    %28 = vector.shape_cast %27 : vector<304xf32> to vector<304x1xf32>
    %29 = vector.broadcast %28 : vector<304x1xf32> to vector<304x8xf32>
    %30 = arith.subf %14, %29 : vector<304x8xf32>
    %31 = math.exp %30 : vector<304x8xf32>
    %cst_16 = arith.constant dense<0.000000e+00> : vector<304xf32>
    %32 = vector.multi_reduction <add>, %31, %cst_16 [1] : vector<304x8xf32> to vector<304xf32>
    %33 = vector.shape_cast %32 : vector<304xf32> to vector<304x1xf32>
    %34 = math.log %33 : vector<304x1xf32>
    %35 = arith.addf %34, %28 : vector<304x1xf32>
    %36 = tpu.iota {dimensions = array<i32: 1>} : vector<304x8xi32>
    %37 = vector.broadcast %17 : vector<304x1xi32> to vector<304x8xi32>
    %38 = arith.cmpi eq, %36, %37 : vector<304x8xi32>
    %cst_17 = arith.constant 0.000000e+00 : f32
    %39 = vector.broadcast %cst_17 : f32 to vector<304x8xf32>
    %40 = arith.select %38, %14, %39 : vector<304x8xi1>, vector<304x8xf32>
    %cst_18 = arith.constant dense<0.000000e+00> : vector<304xf32>
    %41 = vector.multi_reduction <add>, %40, %cst_18 [1] : vector<304x8xf32> to vector<304xf32>
    %42 = vector.shape_cast %41 : vector<304xf32> to vector<304x1xf32>
    %43 = arith.subf %35, %42 : vector<304x1xf32>
    %cst_19 = arith.constant 0.000000e+00 : f32
    %44 = vector.broadcast %cst_19 : f32 to vector<304x1xf32>
    %45 = arith.select %26, %43, %44 : vector<304x1xi1>, vector<304x1xf32>
    %46 = vector.shape_cast %45 : vector<304x1xf32> to vector<1x304x1xf32>
    %cst_20 = arith.constant dense<0.000000e+00> : vector<1xf32>
    %47 = vector.multi_reduction <add>, %46, %cst_20 [1, 2] : vector<1x304x1xf32> to vector<1xf32>
    %48 = vector.shape_cast %47 : vector<1xf32> to vector<1x1x1xf32>
    %49 = vector.extract %48[0, 0, 0] : f32 from vector<1x1x1xf32>
    %50 = arith.extui %26 : vector<304x1xi1> to vector<304x1xi32>
    %51 = arith.sitofp %50 : vector<304x1xi32> to vector<304x1xf32>
    %52 = vector.shape_cast %51 : vector<304x1xf32> to vector<1x304x1xf32>
    %cst_21 = arith.constant dense<0.000000e+00> : vector<1xf32>
    %53 = vector.multi_reduction <add>, %52, %cst_21 [1, 2] : vector<1x304x1xf32> to vector<1xf32>
    %54 = vector.shape_cast %53 : vector<1xf32> to vector<1x1x1xf32>
    %55 = vector.extract %54[0, 0, 0] : f32 from vector<1x1x1xf32>
    %56 = tpu.iota {dimensions = array<i32: 1>} : vector<1x8x128xi32>
    %c0_i32_22 = arith.constant 0 : i32
    %57 = vector.broadcast %c0_i32_22 : i32 to vector<1x8x128xi32>
    %58 = arith.cmpi eq, %56, %57 : vector<1x8x128xi32>
    %c1_i32 = arith.constant 1 : i32
    %59 = vector.broadcast %c1_i32 : i32 to vector<1x8x128xi32>
    %60 = arith.cmpi eq, %56, %59 : vector<1x8x128xi32>
    %cst_23 = arith.constant 0.000000e+00 : f32
    %61 = vector.broadcast %55 : f32 to vector<1x8x128xf32>
    %62 = vector.broadcast %cst_23 : f32 to vector<1x8x128xf32>
    %63 = arith.select %60, %61, %62 : vector<1x8x128xi1>, vector<1x8x128xf32>
    %64 = vector.broadcast %49 : f32 to vector<1x8x128xf32>
    %65 = arith.select %58, %64, %63 : vector<1x8x128xi1>, vector<1x8x128xf32>
    %c0_24 = arith.constant 0 : index
    %c0_25 = arith.constant 0 : index
    %c0_26 = arith.constant 0 : index
    %66 = vector.load %arg8[%c0_24, %c0_25, %c0_26] : memref<1x8x128xf32, #tpu.memory_space<vmem>>, vector<1x8x128xf32>
    tpu.vector_store %arg8[%c0_24, %c0_25, %c0_26], %65 {strides = array<i32>} : memref<1x8x128xf32, #tpu.memory_space<vmem>>, vector<1x8x128xf32>,
    return
  }
  func.func @transform_0(%arg0: i32) -> (i32, i32) {
    %c0_i32 = arith.constant 0 : i32
    %c0_i32_0 = arith.constant 0 : i32
    return %arg0, %c0_i32 : i32, i32
  }
  func.func @transform_1(%arg0: i32) -> (i32, i32) {
    %c0_i32 = arith.constant 0 : i32
    %c0_i32_0 = arith.constant 0 : i32
    return %arg0, %c0_i32 : i32, i32
  }
  func.func @transform_2(%arg0: i32) -> (i32, i32) {
    %c0_i32 = arith.constant 0 : i32
    %c0_i32_0 = arith.constant 0 : i32
    %c0_i32_1 = arith.constant 0 : i32
    return %c0_i32, %c0_i32_0 : i32, i32
  }
  func.func @transform_3(%arg0: i32) -> (i32, i32) {
    %c0_i32 = arith.constant 0 : i32
    %c0_i32_0 = arith.constant 0 : i32
    %c0_i32_1 = arith.constant 0 : i32
    return %c0_i32, %c0_i32_0 : i32, i32
  }
  func.func @transform_4(%arg0: i32) -> (i32, i32) {
    %c0_i32 = arith.constant 0 : i32
    %c0_i32_0 = arith.constant 0 : i32
    %c0_i32_1 = arith.constant 0 : i32
    return %c0_i32, %c0_i32_0 : i32, i32
  }
  func.func @transform_5(%arg0: i32) -> (i32, i32) {
    %c0_i32 = arith.constant 0 : i32
    %c0_i32_0 = arith.constant 0 : i32
    %c0_i32_1 = arith.constant 0 : i32
    return %c0_i32, %c0_i32_0 : i32, i32
  }
  func.func @transform_6(%arg0: i32) -> (i32, i32) {
    %c0_i32 = arith.constant 0 : i32
    %c0_i32_0 = arith.constant 0 : i32
    return %arg0, %c0_i32 : i32, i32
  }
  func.func @transform_7(%arg0: i32) -> (i32, i32, i32) {
    %c0_i32 = arith.constant 0 : i32
    %c0_i32_0 = arith.constant 0 : i32
    %c0_i32_1 = arith.constant 0 : i32
    return %arg0, %c0_i32, %c0_i32_0 : i32, i32, i32
  }
}

</mosaic_0001>

<llo_original>
// kernel: tpu_custom_call.1
$region0: #{tpu_custom_call.1}
  #allocation0 [shape = 'u32[]', space=smem, size = 0x4, offset = 0x4, fixed_abs, tag = 'smem constant byte address 0x4 - core index']
  #allocation1 [shape = 'u32[144,128]{1,0:T(1,128)}', space=vmem, size = 0x12000, scoped, tag = 'internal scratch']
  %s0 = inlined_call_operand.vmem [shape: f32[300,16], index: 0, kind: input, shape index: {}]
  %s1 = inlined_call_operand.vmem [shape: s32[300,1], index: 1, kind: input, shape index: {}]
  %s2 = inlined_call_operand.vmem [shape: bf16[16,32], index: 2, kind: input, shape index: {}]
  %s3 = inlined_call_operand.vmem [shape: f32[1,32], index: 3, kind: input, shape index: {}]
  %s4 = inlined_call_operand.vmem [shape: bf16[32,8], index: 4, kind: input, shape index: {}]
  %s5 = inlined_call_operand.vmem [shape: f32[1,8], index: 5, kind: input, shape index: {}]
  %s6 = inlined_call_operand.vmem [shape: bf16[300,8], index: 6, kind: output, shape index: {0}]
  %s7 = inlined_call_operand.hbm [shape: f32[1,8,128], index: 7, kind: output, shape index: {1}]
  %8 = xla_tuple %s6, %s7
  %s9 = sld [smem:[#allocation0]]
  $region42: #{tpu_custom_call.1} parent=0
    _
  %s11 = ssub.s32 1, %s9
  %s12 = scalar_select 0, %s11, %s9
  $region1: #{tpu_custom_call.1} parent=0
    #allocation2 [shape = 'u8[4096]{0}', space=vmem, size = 0x1000, scoped, tag = 'output window, operand 1, single buffered']
    #allocation3 [shape = 's32[1]{0}', space=sflag, size = 0x4, scoped, tag = 'scoped memory for tpu_custom_call.1']
    %13 = vsyncpa [#allocation3], 0
    // Predicated region
    $region2: #{tpu_custom_call.1} parent=1 // pred_check
      _
    $region3: #{tpu_custom_call.1} parent=1 // pred_check_branch
      %15 = sbr.rel (0) target = $region5
    $region4: #{tpu_custom_call.1} parent=1 // pred_region
      _
    $region5: #{tpu_custom_call.1} parent=1 // pred_fallthru
      _
    // Predicated region
    $region6: #{tpu_custom_call.1} parent=1 // pred_check
      _
    $region7: #{tpu_custom_call.1} parent=1 // pred_check_branch
      %17 = sbr.rel (0) target = $region9
    $region8: #{tpu_custom_call.1} parent=1 // pred_region
      _
    $region9: #{tpu_custom_call.1} parent=1 // pred_fallthru
      _
    // Predicated region
    $region10: #{tpu_custom_call.1} parent=1 // pred_check
      _
    $region11: #{tpu_custom_call.1} parent=1 // pred_check_branch
      %19 = sbr.rel (0) target = $region13
    $region12: #{tpu_custom_call.1} parent=1 // pred_region
      _
    $region13: #{tpu_custom_call.1} parent=1 // pred_fallthru
      _
    // Predicated region
    $region14: #{tpu_custom_call.1} parent=1 // pred_check
      _
    $region15: #{tpu_custom_call.1} parent=1 // pred_check_branch
      %21 = sbr.rel (0) target = $region17
    $region16: #{tpu_custom_call.1} parent=1 // pred_region
      _
    $region17: #{tpu_custom_call.1} parent=1 // pred_fallthru
      _
    // Predicated region
    $region18: #{tpu_custom_call.1} parent=1 // pred_check
      _
    $region19: #{tpu_custom_call.1} parent=1 // pred_check_branch
      %23 = sbr.rel (0) target = $region21
    $region20: #{tpu_custom_call.1} parent=1 // pred_region
      _
    $region21: #{tpu_custom_call.1} parent=1 // pred_fallthru
      _
    // Predicated region
    $region22: #{tpu_custom_call.1} parent=1 // pred_check
      _
    $region23: #{tpu_custom_call.1} parent=1 // pred_check_branch
      %25 = sbr.rel (0) target = $region25
    $region24: #{tpu_custom_call.1} parent=1 // pred_region
      _
    $region25: #{tpu_custom_call.1} parent=1 // pred_fallthru
      _
    %v27 = vld [vmem:[%s0] sm:$0xff]
    %v28 = vld [vmem:[%s0 + $0x8] sm:$0xff]
    %v29 = vld [vmem:[%s0 + $0x10] sm:$0xff]
    %v30 = vld [vmem:[%s0 + $0x18] sm:$0xff]
    %v31 = vld [vmem:[%s0 + $0x20] sm:$0xff]
    %v32 = vld [vmem:[%s0 + $0x28] sm:$0xff]
    %v33 = vld [vmem:[%s0 + $0x30] sm:$0xff]
    %v34 = vld [vmem:[%s0 + $0x38] sm:$0xff]
    %v35 = vld [vmem:[%s0 + $0x40] sm:$0xff]
    %v36 = vld [vmem:[%s0 + $0x48] sm:$0xff]
    %v37 = vld [vmem:[%s0 + $0x50] sm:$0xff]
    %v38 = vld [vmem:[%s0 + $0x58] sm:$0xff]
    %v39 = vld [vmem:[%s0 + $0x60] sm:$0xff]
    %v40 = vld [vmem:[%s0 + $0x68] sm:$0xff]
    %v41 = vld [vmem:[%s0 + $0x70] sm:$0xff]
    %v42 = vld [vmem:[%s0 + $0x78] sm:$0xff]
    %v43 = vld [vmem:[%s0 + $0x80] sm:$0xff]
    %v44 = vld [vmem:[%s0 + $0x88] sm:$0xff]
    %v45 = vld [vmem:[%s0 + $0x90] sm:$0xff]
    %v46 = vld [vmem:[%s0 + $0x98] sm:$0xff]
    %v47 = vld [vmem:[%s0 + $0xa0] sm:$0xff]
    %v48 = vld [vmem:[%s0 + $0xa8] sm:$0xff]
    %v49 = vld [vmem:[%s0 + $0xb0] sm:$0xff]
    %v50 = vld [vmem:[%s0 + $0xb8] sm:$0xff]
    %v51 = vld [vmem:[%s0 + $0xc0] sm:$0xff]
    %v52 = vld [vmem:[%s0 + $0xc8] sm:$0xff]
    %v53 = vld [vmem:[%s0 + $0xd0] sm:$0xff]
    %v54 = vld [vmem:[%s0 + $0xd8] sm:$0xff]
    %v55 = vld [vmem:[%s0 + $0xe0] sm:$0xff]
    %v56 = vld [vmem:[%s0 + $0xe8] sm:$0xff]
    %v57 = vld [vmem:[%s0 + $0xf0] sm:$0xff]
    %v58 = vld [vmem:[%s0 + $0xf8] sm:$0xff]
    %v59 = vld [vmem:[%s0 + $0x100] sm:$0xff]
    %v60 = vld [vmem:[%s0 + $0x108] sm:$0xff]
    %v61 = vld [vmem:[%s0 + $0x110] sm:$0xff]
    %v62 = vld [vmem:[%s0 + $0x118] sm:$0xff]
    %v63 = vld [vmem:[%s0 + $0x120] sm:$0xff]
    %v64 = vld [vmem:[%s0 + $0x128] sm:$0xff]
    %v65 = vpack.c.bf16 %v28, %v27
    %v66 = vpack.c.bf16 %v30, %v29
    %v67 = vpack.c.bf16 %v32, %v31
    %v68 = vpack.c.bf16 %v34, %v33
    %v69 = vpack.c.bf16 %v36, %v35
    %v70 = vpack.c.bf16 %v38, %v37
    %v71 = vpack.c.bf16 %v40, %v39
    %v72 = vpack.c.bf16 %v42, %v41
    %v73 = vpack.c.bf16 %v44, %v43
    %v74 = vpack.c.bf16 %v46, %v45
    %v75 = vpack.c.bf16 %v48, %v47
    %v76 = vpack.c.bf16 %v50, %v49
    %v77 = vpack.c.bf16 %v52, %v51
    %v78 = vpack.c.bf16 %v54, %v53
    %v79 = vpack.c.bf16 %v56, %v55
    %v80 = vpack.c.bf16 %v58, %v57
    %v81 = vpack.c.bf16 %v60, %v59
    %v82 = vpack.c.bf16 %v62, %v61
    %v83 = vpack.c.bf16 %v64, %v63
    %v84 = vld [vmem:[%s2] sm:$0xf]
    %v85 = vld [vmem:[%s2 + $0x4] sm:$0xf]
    %v86 = vld [vmem:[%s3] sm:$0x1]
    %v88 = vlaneseq
    %v89 = vshrl.u32 %v88, 7
    %v90 = vsub.s32 0, %v89
    %v91 = vrot.slane %v86, %v90
    %v95 = vunpack.c.l.b16 %v84
    %v96 = vunpack.c.l.b16 %v85
    %v97 = vpack.c.b16 %v96, %v95
    %vm99 = vcmask 130048
    %v101 = vsel %vm99, %v65, 0
    %v104 = vsel %vm99, %v66, 0
    %v107 = vsel %vm99, %v67, 0
    %v110 = vsel %vm99, %v68, 0
    %v113 = vsel %vm99, %v69, 0
    %v116 = vsel %vm99, %v70, 0
    %v119 = vsel %vm99, %v71, 0
    %v122 = vsel %vm99, %v72, 0
    %v125 = vsel %vm99, %v73, 0
    %v128 = vsel %vm99, %v74, 0
    %v131 = vsel %vm99, %v75, 0
    %v134 = vsel %vm99, %v76, 0
    %v137 = vsel %vm99, %v77, 0
    %v140 = vsel %vm99, %v78, 0
    %v143 = vsel %vm99, %v79, 0
    %v146 = vsel %vm99, %v80, 0
    %v149 = vsel %vm99, %v81, 0
    %v152 = vsel %vm99, %v82, 0
    %v155 = vsel %vm99, %v83, 0
    %157 = vmatprep.subr.bf16.mxu0 0
    %158 = vmatpush1.bf16.msra.mxu0 %v97
    %159 = vmatprep.subr.bf16.mxu0 0
    %160 = vmatpush1.bf16.msra.mxu0 0
    %161 = vmatprep.subr.bf16.mxu0 0
    %162 = vmatpush1.bf16.msra.mxu0 0
    %163 = vmatprep.subr.bf16.mxu0 0
    %164 = vmatpush1.bf16.msra.mxu0 0
    %165 = vmatprep.subr.bf16.mxu0 0
    %166 = vmatpush1.bf16.msra.mxu0 0
    %167 = vmatprep.subr.bf16.mxu0 0
    %168 = vmatpush1.bf16.msra.mxu0 0
    %169 = vmatprep.subr.bf16.mxu0 0
    %170 = vmatpush1.bf16.msra.mxu0 0
    %171 = vmatprep.subr.bf16.mxu0 0
    %172 = vmatpush1.bf16.msra.mxu0 0
    %173 = vmatprep.subr.bf16.mxu0 0
    %174 = vmatpush1.bf16.msra.mxu0 0
    %175 = vmatprep.subr.bf16.mxu0 0
    %176 = vmatpush1.bf16.msra.mxu0 0
    %177 = vmatprep.subr.bf16.mxu0 0
    %178 = vmatpush1.bf16.msra.mxu0 0
    %179 = vmatprep.subr.bf16.mxu0 0
    %180 = vmatpush1.bf16.msra.mxu0 0
    %181 = vmatprep.subr.bf16.mxu0 0
    %182 = vmatpush1.bf16.msra.mxu0 0
    %183 = vmatprep.subr.bf16.mxu0 0
    %184 = vmatpush1.bf16.msra.mxu0 0
    %185 = vmatprep.subr.bf16.mxu0 0
    %186 = vmatpush1.bf16.msra.mxu0 0
    %187 = vmatprep.subr.bf16.mxu0 0
    %188 = vmatpush1.bf16.msra.mxu0 0
    %189 = vmatprep.mubr.bf16.mxu0 0
    %190 = vmatmul.mubr.bf16.gmra.mrb[0].mxu0 %v101
    %v191 = vpop.f32.mrb[0].mxu0
    %v192 = vadd.f32 %v91, %v191
    %v193 = vpop.f32.mrb[0].mxu0
    %v194 = vpop.f32.mrb[0].mxu0
    %v195 = vadd.f32 %v91, %v194
    %v196 = vpop.f32.mrb[0].mxu0
    %197 = vmatprep.mubr.bf16.mxu0 0
    %198 = vmatmul.mubr.bf16.gmra.mrb[0].mxu0 %v104
    %v199 = vpop.f32.mrb[0].mxu0
    %v200 = vadd.f32 %v91, %v199
    %v201 = vpop.f32.mrb[0].mxu0
    %v202 = vpop.f32.mrb[0].mxu0
    %v203 = vadd.f32 %v91, %v202
    %v204 = vpop.f32.mrb[0].mxu0
    %205 = vmatprep.mubr.bf16.mxu0 0
    %206 = vmatmul.mubr.bf16.gmra.mrb[0].mxu0 %v107
    %v207 = vpop.f32.mrb[0].mxu0
    %v208 = vadd.f32 %v91, %v207
    %v209 = vpop.f32.mrb[0].mxu0
    %v210 = vpop.f32.mrb[0].mxu0
    %v211 = vadd.f32 %v91, %v210
    %v212 = vpop.f32.mrb[0].mxu0
    %213 = vmatprep.mubr.bf16.mxu0 0
    %214 = vmatmul.mubr.bf16.gmra.mrb[0].mxu0 %v110
    %v215 = vpop.f32.mrb[0].mxu0
    %v216 = vadd.f32 %v91, %v215
    %v217 = vpop.f32.mrb[0].mxu0
    %v218 = vpop.f32.mrb[0].mxu0
    %v219 = vadd.f32 %v91, %v218
    %v220 = vpop.f32.mrb[0].mxu0
    %221 = vmatprep.mubr.bf16.mxu0 0
    %222 = vmatmul.mubr.bf16.gmra.mrb[0].mxu0 %v113
    %v223 = vpop.f32.mrb[0].mxu0
    %v224 = vadd.f32 %v91, %v223
    %v225 = vpop.f32.mrb[0].mxu0
    %v226 = vpop.f32.mrb[0].mxu0
    %v227 = vadd.f32 %v91, %v226
    %v228 = vpop.f32.mrb[0].mxu0
    %229 = vmatprep.mubr.bf16.mxu0 0
    %230 = vmatmul.mubr.bf16.gmra.mrb[0].mxu0 %v116
    %v231 = vpop.f32.mrb[0].mxu0
    %v232 = vadd.f32 %v91, %v231
    %v233 = vpop.f32.mrb[0].mxu0
    %v234 = vpop.f32.mrb[0].mxu0
    %v235 = vadd.f32 %v91, %v234
    %v236 = vpop.f32.mrb[0].mxu0
    %237 = vmatprep.mubr.bf16.mxu0 0
    %238 = vmatmul.mubr.bf16.gmra.mrb[0].mxu0 %v119
    %v239 = vpop.f32.mrb[0].mxu0
    %v240 = vadd.f32 %v91, %v239
    %v241 = vpop.f32.mrb[0].mxu0
    %v242 = vpop.f32.mrb[0].mxu0
    %v243 = vadd.f32 %v91, %v242
    %v244 = vpop.f32.mrb[0].mxu0
    %245 = vmatprep.mubr.bf16.mxu0 0
    %246 = vmatmul.mubr.bf16.gmra.mrb[0].mxu0 %v122
    %v247 = vpop.f32.mrb[0].mxu0
    %v248 = vadd.f32 %v91, %v247
    %v249 = vpop.f32.mrb[0].mxu0
    %v250 = vpop.f32.mrb[0].mxu0
    %v251 = vadd.f32 %v91, %v250
    %v252 = vpop.f32.mrb[0].mxu0
    %253 = vmatprep.mubr.bf16.mxu0 0
    %254 = vmatmul.mubr.bf16.gmra.mrb[0].mxu0 %v125
    %v255 = vpop.f32.mrb[0].mxu0
    %v256 = vadd.f32 %v91, %v255
    %v257 = vpop.f32.mrb[0].mxu0
    %v258 = vpop.f32.mrb[0].mxu0
    %v259 = vadd.f32 %v91, %v258
    %v260 = vpop.f32.mrb[0].mxu0
    %261 = vmatprep.mubr.bf16.mxu0 0
    %262 = vmatmul.mubr.bf16.gmra.mrb[0].mxu0 %v128
    %v263 = vpop.f32.mrb[0].mxu0
    %v264 = vadd.f32 %v91, %v263
    %v265 = vpop.f32.mrb[0].mxu0
    %v266 = vpop.f32.mrb[0].mxu0
    %v267 = vadd.f32 %v91, %v266
    %v268 = vpop.f32.mrb[0].mxu0
    %269 = vmatprep.mubr.bf16.mxu0 0
    %270 = vmatmul.mubr.bf16.gmra.mrb[0].mxu0 %v131
    %v271 = vpop.f32.mrb[0].mxu0
    %v272 = vadd.f32 %v91, %v271
    %v273 = vpop.f32.mrb[0].mxu0
    %v274 = vpop.f32.mrb[0].mxu0
    %v275 = vadd.f32 %v91, %v274
    %v276 = vpop.f32.mrb[0].mxu0
    %277 = vmatprep.mubr.bf16.mxu0 0
    %278 = vmatmul.mubr.bf16.gmra.mrb[0].mxu0 %v134
    %v279 = vpop.f32.mrb[0].mxu0
    %v280 = vadd.f32 %v91, %v279
    %v281 = vpop.f32.mrb[0].mxu0
    %v282 = vpop.f32.mrb[0].mxu0
    %v283 = vadd.f32 %v91, %v282
    %v284 = vpop.f32.mrb[0].mxu0
    %285 = vmatprep.mubr.bf16.mxu0 0
    %286 = vmatmul.mubr.bf16.gmra.mrb[0].mxu0 %v137
    %v287 = vpop.f32.mrb[0].mxu0
    %v288 = vadd.f32 %v91, %v287
    %v289 = vpop.f32.mrb[0].mxu0
    %v290 = vpop.f32.mrb[0].mxu0
    %v291 = vadd.f32 %v91, %v290
    %v292 = vpop.f32.mrb[0].mxu0
    %293 = vmatprep.mubr.bf16.mxu0 0
    %294 = vmatmul.mubr.bf16.gmra.mrb[0].mxu0 %v140
    %v295 = vpop.f32.mrb[0].mxu0
    %v296 = vadd.f32 %v91, %v295
    %v297 = vpop.f32.mrb[0].mxu0
    %v298 = vpop.f32.mrb[0].mxu0
    %v299 = vadd.f32 %v91, %v298
    %v300 = vpop.f32.mrb[0].mxu0
    %301 = vmatprep.mubr.bf16.mxu0 0
    %302 = vmatmul.mubr.bf16.gmra.mrb[0].mxu0 %v143
    %v303 = vpop.f32.mrb[0].mxu0
    %v304 = vadd.f32 %v91, %v303
    %v305 = vpop.f32.mrb[0].mxu0
    %v306 = vpop.f32.mrb[0].mxu0
    %v307 = vadd.f32 %v91, %v306
    %v308 = vpop.f32.mrb[0].mxu0
    %309 = vmatprep.mubr.bf16.mxu0 0
    %310 = vmatmul.mubr.bf16.gmra.mrb[0].mxu0 %v146
    %v311 = vpop.f32.mrb[0].mxu0
    %v312 = vadd.f32 %v91, %v311
    %v313 = vpop.f32.mrb[0].mxu0
    %v314 = vpop.f32.mrb[0].mxu0
    %v315 = vadd.f32 %v91, %v314
    %v316 = vpop.f32.mrb[0].mxu0
    %317 = vmatprep.mubr.bf16.mxu0 0
    %318 = vmatmul.mubr.bf16.gmra.mrb[0].mxu0 %v149
    %v319 = vpop.f32.mrb[0].mxu0
    %v320 = vadd.f32 %v91, %v319
    %v321 = vpop.f32.mrb[0].mxu0
    %v322 = vpop.f32.mrb[0].mxu0
    %v323 = vadd.f32 %v91, %v322
    %v324 = vpop.f32.mrb[0].mxu0
    %325 = vmatprep.mubr.bf16.mxu0 0
    %326 = vmatmul.mubr.bf16.gmra.mrb[0].mxu0 %v152
    %v327 = vpop.f32.mrb[0].mxu0
    %v328 = vadd.f32 %v91, %v327
    %v329 = vpop.f32.mrb[0].mxu0
    %v330 = vpop.f32.mrb[0].mxu0
    %v331 = vadd.f32 %v91, %v330
    %v332 = vpop.f32.mrb[0].mxu0
    %333 = vmatprep.mubr.bf16.mxu0 0
    %334 = vmatmul.mubr.bf16.gmra.mrb[0].mxu0 %v155
    %v335 = vpop.f32.mrb[0].mxu0
    %v336 = vadd.f32 %v91, %v335
    %v337 = vpop.f32.mrb[0].mxu0
    %v338 = vpop.f32.mrb[0].mxu0
    %v339 = vadd.f32 %v91, %v338
    %v340 = vpop.f32.mrb[0].mxu0
    %341 = vdwg.mxu0
    %v342 = vmax.f32 %v192, 0.0
    %v343 = vmax.f32 %v195, 0.0
    %v344 = vmax.f32 %v200, 0.0
    %v345 = vmax.f32 %v203, 0.0
    %v346 = vmax.f32 %v208, 0.0
    %v347 = vmax.f32 %v211, 0.0
    %v348 = vmax.f32 %v216, 0.0
    %v349 = vmax.f32 %v219, 0.0
    %v350 = vmax.f32 %v224, 0.0
    %v351 = vmax.f32 %v227, 0.0
    %v352 = vmax.f32 %v232, 0.0
    %v353 = vmax.f32 %v235, 0.0
    %v354 = vmax.f32 %v240, 0.0
    %v355 = vmax.f32 %v243, 0.0
    %v356 = vmax.f32 %v248, 0.0
    %v357 = vmax.f32 %v251, 0.0
    %v358 = vmax.f32 %v256, 0.0
    %v359 = vmax.f32 %v259, 0.0
    %v360 = vmax.f32 %v264, 0.0
    %v361 = vmax.f32 %v267, 0.0
    %v362 = vmax.f32 %v272, 0.0
    %v363 = vmax.f32 %v275, 0.0
    %v364 = vmax.f32 %v280, 0.0
    %v365 = vmax.f32 %v283, 0.0
    %v366 = vmax.f32 %v288, 0.0
    %v367 = vmax.f32 %v291, 0.0
    %v368 = vmax.f32 %v296, 0.0
    %v369 = vmax.f32 %v299, 0.0
    %v370 = vmax.f32 %v304, 0.0
    %v371 = vmax.f32 %v307, 0.0
    %v372 = vmax.f32 %v312, 0.0
    %v373 = vmax.f32 %v315, 0.0
    %v374 = vmax.f32 %v320, 0.0
    %v375 = vmax.f32 %v323, 0.0
    %v376 = vmax.f32 %v328, 0.0
    %v377 = vmax.f32 %v331, 0.0
    %v378 = vmax.f32 %v336, 0.0
    %v379 = vmax.f32 %v339, 0.0
    %v380 = vpack.c.bf16 %v343, %v342
    %v381 = vpack.c.bf16 %v345, %v344
    %v382 = vpack.c.bf16 %v347, %v346
    %v383 = vpack.c.bf16 %v349, %v348
    %v384 = vpack.c.bf16 %v351, %v350
    %v385 = vpack.c.bf16 %v353, %v352
    %v386 = vpack.c.bf16 %v355, %v354
    %v387 = vpack.c.bf16 %v357, %v356
    %v388 = vpack.c.bf16 %v359, %v358
    %v389 = vpack.c.bf16 %v361, %v360
    %v390 = vpack.c.bf16 %v363, %v362
    %v391 = vpack.c.bf16 %v365, %v364
    %v392 = vpack.c.bf16 %v367, %v366
    %v393 = vpack.c.bf16 %v369, %v368
    %v394 = vpack.c.bf16 %v371, %v370
    %v395 = vpack.c.bf16 %v373, %v372
    %v396 = vpack.c.bf16 %v375, %v374
    %v397 = vpack.c.bf16 %v377, %v376
    %v398 = vpack.c.bf16 %v379, %v378
    %v399 = vld [vmem:[%s4] sm:$0xf]
    %v400 = vld [vmem:[%s4 + $0x4] sm:$0xf]
    %v401 = vld [vmem:[%s4 + $0x8] sm:$0xf]
    %v402 = vld [vmem:[%s4 + $0xc] sm:$0xf]
    %v403 = vld [vmem:[%s5] sm:$0x1]
    %v405 = vlaneseq
    %v406 = vshrl.u32 %v405, 7
    %v407 = vsub.s32 0, %v406
    %v408 = vrot.slane %v403, %v407
    %v414 = vunpack.c.l.b16 %v399
    %v415 = vunpack.c.l.b16 %v400
    %v416 = vunpack.c.l.b16 %v401
    %v417 = vunpack.c.l.b16 %v402
    %v418 = vpack.c.b16 %v415, %v414
    %v419 = vpack.c.b16 %v417, %v416
    %vm422 = vcmask 261120
    %v424 = vsel %vm422, %v380, 0
    %v427 = vsel %vm422, %v381, 0
    %v430 = vsel %vm422, %v382, 0
    %v433 = vsel %vm422, %v383, 0
    %v436 = vsel %vm422, %v384, 0
    %v439 = vsel %vm422, %v385, 0
    %v442 = vsel %vm422, %v386, 0
    %v445 = vsel %vm422, %v387, 0
    %v448 = vsel %vm422, %v388, 0
    %v451 = vsel %vm422, %v389, 0
    %v454 = vsel %vm422, %v390, 0
    %v457 = vsel %vm422, %v391, 0
    %v460 = vsel %vm422, %v392, 0
    %v463 = vsel %vm422, %v393, 0
    %v466 = vsel %vm422, %v394, 0
    %v469 = vsel %vm422, %v395, 0
    %v472 = vsel %vm422, %v396, 0
    %v475 = vsel %vm422, %v397, 0
    %v478 = vsel %vm422, %v398, 0
    %480 = vmatprep.subr.bf16.mxu0 0
    %481 = vmatpush1.bf16.msra.mxu0 %v418
    %482 = vmatprep.subr.bf16.mxu0 0
    %483 = vmatpush1.bf16.msra.mxu0 %v419
    %484 = vmatprep.subr.bf16.mxu0 0
    %485 = vmatpush1.bf16.msra.mxu0 0
    %486 = vmatprep.subr.bf16.mxu0 0
    %487 = vmatpush1.bf16.msra.mxu0 0
    %488 = vmatprep.subr.bf16.mxu0 0
    %489 = vmatpush1.bf16.msra.mxu0 0
    %490 = vmatprep.subr.bf16.mxu0 0
    %491 = vmatpush1.bf16.msra.mxu0 0
    %492 = vmatprep.subr.bf16.mxu0 0
    %493 = vmatpush1.bf16.msra.mxu0 0
    %494 = vmatprep.subr.bf16.mxu0 0
    %495 = vmatpush1.bf16.msra.mxu0 0
    %496 = vmatprep.subr.bf16.mxu0 0
    %497 = vmatpush1.bf16.msra.mxu0 0
    %498 = vmatprep.subr.bf16.mxu0 0
    %499 = vmatpush1.bf16.msra.mxu0 0
    %500 = vmatprep.subr.bf16.mxu0 0
    %501 = vmatpush1.bf16.msra.mxu0 0
    %502 = vmatprep.subr.bf16.mxu0 0
    %503 = vmatpush1.bf16.msra.mxu0 0
    %504 = vmatprep.subr.bf16.mxu0 0
    %505 = vmatpush1.bf16.msra.mxu0 0
    %506 = vmatprep.subr.bf16.mxu0 0
    %507 = vmatpush1.bf16.msra.mxu0 0
    %508 = vmatprep.subr.bf16.mxu0 0
    %509 = vmatpush1.bf16.msra.mxu0 0
    %510 = vmatprep.subr.bf16.mxu0 0
    %511 = vmatpush1.bf16.msra.mxu0 0
    %512 = vmatprep.mubr.bf16.mxu0 0
    %513 = vmatmul.mubr.bf16.gmra.mrb[0].mxu0 %v424
    %v514 = vpop.f32.mrb[0].mxu0
    %v515 = vadd.f32 %v408, %v514
    %v516 = vpop.f32.mrb[0].mxu0
    %v517 = vpop.f32.mrb[0].mxu0
    %v518 = vadd.f32 %v408, %v517
    %v519 = vpop.f32.mrb[0].mxu0
    %520 = vmatprep.mubr.bf16.mxu0 0
    %521 = vmatmul.mubr.bf16.gmra.mrb[0].mxu0 %v427
    %v522 = vpop.f32.mrb[0].mxu0
    %v523 = vadd.f32 %v408, %v522
    %v524 = vpop.f32.mrb[0].mxu0
    %v525 = vpop.f32.mrb[0].mxu0
    %v526 = vadd.f32 %v408, %v525
    %v527 = vpop.f32.mrb[0].mxu0
    %528 = vmatprep.mubr.bf16.mxu0 0
    %529 = vmatmul.mubr.bf16.gmra.mrb[0].mxu0 %v430
    %v530 = vpop.f32.mrb[0].mxu0
    %v531 = vadd.f32 %v408, %v530
    %v532 = vpop.f32.mrb[0].mxu0
    %v533 = vpop.f32.mrb[0].mxu0
    %v534 = vadd.f32 %v408, %v533
    %v535 = vpop.f32.mrb[0].mxu0
    %536 = vmatprep.mubr.bf16.mxu0 0
    %537 = vmatmul.mubr.bf16.gmra.mrb[0].mxu0 %v433
    %v538 = vpop.f32.mrb[0].mxu0
    %v539 = vadd.f32 %v408, %v538
    %v540 = vpop.f32.mrb[0].mxu0
    %v541 = vpop.f32.mrb[0].mxu0
    %v542 = vadd.f32 %v408, %v541
    %v543 = vpop.f32.mrb[0].mxu0
    %544 = vmatprep.mubr.bf16.mxu0 0
    %545 = vmatmul.mubr.bf16.gmra.mrb[0].mxu0 %v436
    %v546 = vpop.f32.mrb[0].mxu0
    %v547 = vadd.f32 %v408, %v546
    %v548 = vpop.f32.mrb[0].mxu0
    %v549 = vpop.f32.mrb[0].mxu0
    %v550 = vadd.f32 %v408, %v549
    %v551 = vpop.f32.mrb[0].mxu0
    %552 = vmatprep.mubr.bf16.mxu0 0
    %553 = vmatmul.mubr.bf16.gmra.mrb[0].mxu0 %v439
    %v554 = vpop.f32.mrb[0].mxu0
    %v555 = vadd.f32 %v408, %v554
    %v556 = vpop.f32.mrb[0].mxu0
    %v557 = vpop.f32.mrb[0].mxu0
    %v558 = vadd.f32 %v408, %v557
    %v559 = vpop.f32.mrb[0].mxu0
    %560 = vmatprep.mubr.bf16.mxu0 0
    %561 = vmatmul.mubr.bf16.gmra.mrb[0].mxu0 %v442
    %v562 = vpop.f32.mrb[0].mxu0
    %v563 = vadd.f32 %v408, %v562
    %v564 = vpop.f32.mrb[0].mxu0
    %v565 = vpop.f32.mrb[0].mxu0
    %v566 = vadd.f32 %v408, %v565
    %v567 = vpop.f32.mrb[0].mxu0
    %568 = vmatprep.mubr.bf16.mxu0 0
    %569 = vmatmul.mubr.bf16.gmra.mrb[0].mxu0 %v445
    %v570 = vpop.f32.mrb[0].mxu0
    %v571 = vadd.f32 %v408, %v570
    %v572 = vpop.f32.mrb[0].mxu0
    %v573 = vpop.f32.mrb[0].mxu0
    %v574 = vadd.f32 %v408, %v573
    %v575 = vpop.f32.mrb[0].mxu0
    %576 = vmatprep.mubr.bf16.mxu0 0
    %577 = vmatmul.mubr.bf16.gmra.mrb[0].mxu0 %v448
    %v578 = vpop.f32.mrb[0].mxu0
    %v579 = vadd.f32 %v408, %v578
    %v580 = vpop.f32.mrb[0].mxu0
    %v581 = vpop.f32.mrb[0].mxu0
    %v582 = vadd.f32 %v408, %v581
    %v583 = vpop.f32.mrb[0].mxu0
    %584 = vmatprep.mubr.bf16.mxu0 0
    %585 = vmatmul.mubr.bf16.gmra.mrb[0].mxu0 %v451
    %v586 = vpop.f32.mrb[0].mxu0
    %v587 = vadd.f32 %v408, %v586
    %v588 = vpop.f32.mrb[0].mxu0
    %v589 = vpop.f32.mrb[0].mxu0
    %v590 = vadd.f32 %v408, %v589
    %v591 = vpop.f32.mrb[0].mxu0
    %592 = vmatprep.mubr.bf16.mxu0 0
    %593 = vmatmul.mubr.bf16.gmra.mrb[0].mxu0 %v454
    %v594 = vpop.f32.mrb[0].mxu0
    %v595 = vadd.f32 %v408, %v594
    %v596 = vpop.f32.mrb[0].mxu0
    %v597 = vpop.f32.mrb[0].mxu0
    %v598 = vadd.f32 %v408, %v597
    %v599 = vpop.f32.mrb[0].mxu0
    %600 = vmatprep.mubr.bf16.mxu0 0
    %601 = vmatmul.mubr.bf16.gmra.mrb[0].mxu0 %v457
    %v602 = vpop.f32.mrb[0].mxu0
    %v603 = vadd.f32 %v408, %v602
    %v604 = vpop.f32.mrb[0].mxu0
    %v605 = vpop.f32.mrb[0].mxu0
    %v606 = vadd.f32 %v408, %v605
    %v607 = vpop.f32.mrb[0].mxu0
    %608 = vmatprep.mubr.bf16.mxu0 0
    %609 = vmatmul.mubr.bf16.gmra.mrb[0].mxu0 %v460
    %v610 = vpop.f32.mrb[0].mxu0
    %v611 = vadd.f32 %v408, %v610
    %v612 = vpop.f32.mrb[0].mxu0
    %v613 = vpop.f32.mrb[0].mxu0
    %v614 = vadd.f32 %v408, %v613
    %v615 = vpop.f32.mrb[0].mxu0
    %616 = vmatprep.mubr.bf16.mxu0 0
    %617 = vmatmul.mubr.bf16.gmra.mrb[0].mxu0 %v463
    %v618 = vpop.f32.mrb[0].mxu0
    %v619 = vadd.f32 %v408, %v618
    %v620 = vpop.f32.mrb[0].mxu0
    %v621 = vpop.f32.mrb[0].mxu0
    %v622 = vadd.f32 %v408, %v621
    %v623 = vpop.f32.mrb[0].mxu0
    %624 = vmatprep.mubr.bf16.mxu0 0
    %625 = vmatmul.mubr.bf16.gmra.mrb[0].mxu0 %v466
    %v626 = vpop.f32.mrb[0].mxu0
    %v627 = vadd.f32 %v408, %v626
    %v628 = vpop.f32.mrb[0].mxu0
    %v629 = vpop.f32.mrb[0].mxu0
    %v630 = vadd.f32 %v408, %v629
    %v631 = vpop.f32.mrb[0].mxu0
    %632 = vmatprep.mubr.bf16.mxu0 0
    %633 = vmatmul.mubr.bf16.gmra.mrb[0].mxu0 %v469
    %v634 = vpop.f32.mrb[0].mxu0
    %v635 = vadd.f32 %v408, %v634
    %v636 = vpop.f32.mrb[0].mxu0
    %v637 = vpop.f32.mrb[0].mxu0
    %v638 = vadd.f32 %v408, %v637
    %v639 = vpop.f32.mrb[0].mxu0
    %640 = vmatprep.mubr.bf16.mxu0 0
    %641 = vmatmul.mubr.bf16.gmra.mrb[0].mxu0 %v472
    %v642 = vpop.f32.mrb[0].mxu0
    %v643 = vadd.f32 %v408, %v642
    %v644 = vpop.f32.mrb[0].mxu0
    %v645 = vpop.f32.mrb[0].mxu0
    %v646 = vadd.f32 %v408, %v645
    %v647 = vpop.f32.mrb[0].mxu0
    %648 = vmatprep.mubr.bf16.mxu0 0
    %649 = vmatmul.mubr.bf16.gmra.mrb[0].mxu0 %v475
    %v650 = vpop.f32.mrb[0].mxu0
    %v651 = vadd.f32 %v408, %v650
    %v652 = vpop.f32.mrb[0].mxu0
    %v653 = vpop.f32.mrb[0].mxu0
    %v654 = vadd.f32 %v408, %v653
    %v655 = vpop.f32.mrb[0].mxu0
    %656 = vmatprep.mubr.bf16.mxu0 0
    %657 = vmatmul.mubr.bf16.gmra.mrb[0].mxu0 %v478
    %v658 = vpop.f32.mrb[0].mxu0
    %v659 = vadd.f32 %v408, %v658
    %v660 = vpop.f32.mrb[0].mxu0
    %v661 = vpop.f32.mrb[0].mxu0
    %v662 = vadd.f32 %v408, %v661
    %v663 = vpop.f32.mrb[0].mxu0
    %664 = vdwg.mxu0
    %v665 = vpack.c.bf16 %v518, %v515
    %v666 = vpack.c.bf16 %v526, %v523
    %v667 = vpack.c.bf16 %v534, %v531
    %v668 = vpack.c.bf16 %v542, %v539
    %v669 = vpack.c.bf16 %v550, %v547
    %v670 = vpack.c.bf16 %v558, %v555
    %v671 = vpack.c.bf16 %v566, %v563
    %v672 = vpack.c.bf16 %v574, %v571
    %v673 = vpack.c.bf16 %v582, %v579
    %v674 = vpack.c.bf16 %v590, %v587
    %v675 = vpack.c.bf16 %v598, %v595
    %v676 = vpack.c.bf16 %v606, %v603
    %v677 = vpack.c.bf16 %v614, %v611
    %v678 = vpack.c.bf16 %v622, %v619
    %v679 = vpack.c.bf16 %v630, %v627
    %v680 = vpack.c.bf16 %v638, %v635
    %v681 = vpack.c.bf16 %v646, %v643
    %v682 = vpack.c.bf16 %v654, %v651
    %v683 = vpack.c.bf16 %v662, %v659
    %v703 = vunpack.c.l.b16 %v665
    %v704 = vunpack.c.h.b16 %v665
    %v705 = vunpack.c.l.b16 %v666
    %v706 = vunpack.c.h.b16 %v666
    %v707 = vunpack.c.l.b16 %v667
    %v708 = vunpack.c.h.b16 %v667
    %v709 = vunpack.c.l.b16 %v668
    %v710 = vunpack.c.h.b16 %v668
    %v711 = vunpack.c.l.b16 %v669
    %v712 = vunpack.c.h.b16 %v669
    %v713 = vunpack.c.l.b16 %v670
    %v714 = vunpack.c.h.b16 %v670
    %v715 = vunpack.c.l.b16 %v671
    %v716 = vunpack.c.h.b16 %v671
    %v717 = vunpack.c.l.b16 %v672
    %v718 = vunpack.c.h.b16 %v672
    %v719 = vunpack.c.l.b16 %v673
    %v720 = vunpack.c.h.b16 %v673
    %v721 = vunpack.c.l.b16 %v674
    %v722 = vunpack.c.h.b16 %v674
    %v723 = vunpack.c.l.b16 %v675
    %v724 = vunpack.c.h.b16 %v675
    %v725 = vunpack.c.l.b16 %v676
    %v726 = vunpack.c.h.b16 %v676
    %v727 = vunpack.c.l.b16 %v677
    %v728 = vunpack.c.h.b16 %v677
    %v729 = vunpack.c.l.b16 %v678
    %v730 = vunpack.c.h.b16 %v678
    %v731 = vunpack.c.l.b16 %v679
    %v732 = vunpack.c.h.b16 %v679
    %v733 = vunpack.c.l.b16 %v680
    %v734 = vunpack.c.h.b16 %v680
    %v735 = vunpack.c.l.b16 %v681
    %v736 = vunpack.c.h.b16 %v681
    %v737 = vunpack.c.l.b16 %v682
    %v738 = vunpack.c.h.b16 %v682
    %v739 = vunpack.c.l.b16 %v683
    %v740 = vunpack.c.h.b16 %v683
    %v741 = vpack.c.b16 %v703, %v703
    %v742 = vpack.c.b16 %v704, %v704
    %v743 = vpack.c.b16 %v705, %v705
    %v744 = vpack.c.b16 %v706, %v706
    %v745 = vpack.c.b16 %v707, %v707
    %v746 = vpack.c.b16 %v708, %v708
    %v747 = vpack.c.b16 %v709, %v709
    %v748 = vpack.c.b16 %v710, %v710
    %v749 = vpack.c.b16 %v711, %v711
    %v750 = vpack.c.b16 %v712, %v712
    %v751 = vpack.c.b16 %v713, %v713
    %v752 = vpack.c.b16 %v714, %v714
    %v753 = vpack.c.b16 %v715, %v715
    %v754 = vpack.c.b16 %v716, %v716
    %v755 = vpack.c.b16 %v717, %v717
    %v756 = vpack.c.b16 %v718, %v718
    %v757 = vpack.c.b16 %v719, %v719
    %v758 = vpack.c.b16 %v720, %v720
    %v759 = vpack.c.b16 %v721, %v721
    %v760 = vpack.c.b16 %v722, %v722
    %v761 = vpack.c.b16 %v723, %v723
    %v762 = vpack.c.b16 %v724, %v724
    %v763 = vpack.c.b16 %v725, %v725
    %v764 = vpack.c.b16 %v726, %v726
    %v765 = vpack.c.b16 %v727, %v727
    %v766 = vpack.c.b16 %v728, %v728
    %v767 = vpack.c.b16 %v729, %v729
    %v768 = vpack.c.b16 %v730, %v730
    %v769 = vpack.c.b16 %v731, %v731
    %v770 = vpack.c.b16 %v732, %v732
    %v771 = vpack.c.b16 %v733, %v733
    %v772 = vpack.c.b16 %v734, %v734
    %v773 = vpack.c.b16 %v735, %v735
    %v774 = vpack.c.b16 %v736, %v736
    %v775 = vpack.c.b16 %v737, %v737
    %v776 = vpack.c.b16 %v738, %v738
    %v777 = vpack.c.b16 %v739, %v739
    %v778 = vpack.c.b16 %v740, %v740
    %vm817 = vcmask 60416
    %818 = vst.msk [vmem:[%s6] sm:$0xf] %vm817, %v741
    %819 = vst.msk [vmem:[%s6 + $0x4] sm:$0xf] %vm817, %v742
    %820 = vst.msk [vmem:[%s6 + $0x8] sm:$0xf] %vm817, %v743
    %821 = vst.msk [vmem:[%s6 + $0xc] sm:$0xf] %vm817, %v744
    %822 = vst.msk [vmem:[%s6 + $0x10] sm:$0xf] %vm817, %v745
    %823 = vst.msk [vmem:[%s6 + $0x14] sm:$0xf] %vm817, %v746
    %824 = vst.msk [vmem:[%s6 + $0x18] sm:$0xf] %vm817, %v747
    %825 = vst.msk [vmem:[%s6 + $0x1c] sm:$0xf] %vm817, %v748
    %826 = vst.msk [vmem:[%s6 + $0x20] sm:$0xf] %vm817, %v749
    %827 = vst.msk [vmem:[%s6 + $0x24] sm:$0xf] %vm817, %v750
    %828 = vst.msk [vmem:[%s6 + $0x28] sm:$0xf] %vm817, %v751
    %829 = vst.msk [vmem:[%s6 + $0x2c] sm:$0xf] %vm817, %v752
    %830 = vst.msk [vmem:[%s6 + $0x30] sm:$0xf] %vm817, %v753
    %831 = vst.msk [vmem:[%s6 + $0x34] sm:$0xf] %vm817, %v754
    %832 = vst.msk [vmem:[%s6 + $0x38] sm:$0xf] %vm817, %v755
    %833 = vst.msk [vmem:[%s6 + $0x3c] sm:$0xf] %vm817, %v756
    %834 = vst.msk [vmem:[%s6 + $0x40] sm:$0xf] %vm817, %v757
    %835 = vst.msk [vmem:[%s6 + $0x44] sm:$0xf] %vm817, %v758
    %836 = vst.msk [vmem:[%s6 + $0x48] sm:$0xf] %vm817, %v759
    %837 = vst.msk [vmem:[%s6 + $0x4c] sm:$0xf] %vm817, %v760
    %838 = vst.msk [vmem:[%s6 + $0x50] sm:$0xf] %vm817, %v761
    %839 = vst.msk [vmem:[%s6 + $0x54] sm:$0xf] %vm817, %v762
    %840 = vst.msk [vmem:[%s6 + $0x58] sm:$0xf] %vm817, %v763
    %841 = vst.msk [vmem:[%s6 + $0x5c] sm:$0xf] %vm817, %v764
    %842 = vst.msk [vmem:[%s6 + $0x60] sm:$0xf] %vm817, %v765
    %843 = vst.msk [vmem:[%s6 + $0x64] sm:$0xf] %vm817, %v766
    %844 = vst.msk [vmem:[%s6 + $0x68] sm:$0xf] %vm817, %v767
    %845 = vst.msk [vmem:[%s6 + $0x6c] sm:$0xf] %vm817, %v768
    %846 = vst.msk [vmem:[%s6 + $0x70] sm:$0xf] %vm817, %v769
    %847 = vst.msk [vmem:[%s6 + $0x74] sm:$0xf] %vm817, %v770
    %848 = vst.msk [vmem:[%s6 + $0x78] sm:$0xf] %vm817, %v771
    %849 = vst.msk [vmem:[%s6 + $0x7c] sm:$0xf] %vm817, %v772
    %850 = vst.msk [vmem:[%s6 + $0x80] sm:$0xf] %vm817, %v773
    %851 = vst.msk [vmem:[%s6 + $0x84] sm:$0xf] %vm817, %v774
    %852 = vst.msk [vmem:[%s6 + $0x88] sm:$0xf] %vm817, %v775
    %853 = vst.msk [vmem:[%s6 + $0x8c] sm:$0xf] %vm817, %v776
    %854 = vst.msk [vmem:[%s6 + $0x90] sm:$0xf] %vm817, %v777
    %855 = vst.msk [vmem:[%s6 + $0x94] sm:$0xf] %vm817, %v778
    %v856 = vld [vmem:[%s1] sm:$0xff]
    %v857 = vld [vmem:[%s1 + $0x8] sm:$0xff]
    %v858 = vld [vmem:[%s1 + $0x10] sm:$0xff]
    %v859 = vld [vmem:[%s1 + $0x18] sm:$0xff]
    %v860 = vld [vmem:[%s1 + $0x20] sm:$0xff]
    %v861 = vld [vmem:[%s1 + $0x28] sm:$0xff]
    %v862 = vld [vmem:[%s1 + $0x30] sm:$0xff]
    %v863 = vld [vmem:[%s1 + $0x38] sm:$0xff]
    %v864 = vld [vmem:[%s1 + $0x40] sm:$0xff]
    %v865 = vld [vmem:[%s1 + $0x48] sm:$0xff]
    %v866 = vld [vmem:[%s1 + $0x50] sm:$0xff]
    %v867 = vld [vmem:[%s1 + $0x58] sm:$0xff]
    %v868 = vld [vmem:[%s1 + $0x60] sm:$0xff]
    %v869 = vld [vmem:[%s1 + $0x68] sm:$0xff]
    %v870 = vld [vmem:[%s1 + $0x70] sm:$0xff]
    %v871 = vld [vmem:[%s1 + $0x78] sm:$0xff]
    %v872 = vld [vmem:[%s1 + $0x80] sm:$0xff]
    %v873 = vld [vmem:[%s1 + $0x88] sm:$0xff]
    %v874 = vld [vmem:[%s1 + $0x90] sm:$0xff]
    %v875 = vld [vmem:[%s1 + $0x98] sm:$0xff]
    %v876 = vld [vmem:[%s1 + $0xa0] sm:$0xff]
    %v877 = vld [vmem:[%s1 + $0xa8] sm:$0xff]
    %v878 = vld [vmem:[%s1 + $0xb0] sm:$0xff]
    %v879 = vld [vmem:[%s1 + $0xb8] sm:$0xff]
    %v880 = vld [vmem:[%s1 + $0xc0] sm:$0xff]
    %v881 = vld [vmem:[%s1 + $0xc8] sm:$0xff]
    %v882 = vld [vmem:[%s1 + $0xd0] sm:$0xff]
    %v883 = vld [vmem:[%s1 + $0xd8] sm:$0xff]
    %v884 = vld [vmem:[%s1 + $0xe0] sm:$0xff]
    %v885 = vld [vmem:[%s1 + $0xe8] sm:$0xff]
    %v886 = vld [vmem:[%s1 + $0xf0] sm:$0xff]
    %v887 = vld [vmem:[%s1 + $0xf8] sm:$0xff]
    %v888 = vld [vmem:[%s1 + $0x100] sm:$0xff]
    %v889 = vld [vmem:[%s1 + $0x108] sm:$0xff]
    %v890 = vld [vmem:[%s1 + $0x110] sm:$0xff]
    %v891 = vld [vmem:[%s1 + $0x118] sm:$0xff]
    %v892 = vld [vmem:[%s1 + $0x120] sm:$0xff]
    %v893 = vld [vmem:[%s1 + $0x128] sm:$0xff]
    %s894 = smul.u32 0, 304
    %v895 = vlaneseq
    %v896 = vshrl.u32 %v895, 7
    %v897 = vadd.s32 %v896, 8
    %v898 = vadd.s32 %v896, 16
    %v899 = vadd.s32 %v896, 24
    %v900 = vadd.s32 %v896, 32
    %v901 = vadd.s32 %v896, 40
    %v902 = vadd.s32 %v896, 48
    %v903 = vadd.s32 %v896, 56
    %v904 = vadd.s32 %v896, 64
    %v905 = vadd.s32 %v896, 72
    %v906 = vadd.s32 %v896, 80
    %v907 = vadd.s32 %v896, 88
    %v908 = vadd.s32 %v896, 96
    %v909 = vadd.s32 %v896, 104
    %v910 = vadd.s32 %v896, 112
    %v911 = vadd.s32 %v896, 120
    %v912 = vadd.s32 %v896, 128
    %v913 = vadd.s32 %v896, 136
    %v914 = vadd.s32 %v896, 144
    %v915 = vadd.s32 %v896, 152
    %v916 = vadd.s32 %v896, 160
    %v917 = vadd.s32 %v896, 168
    %v918 = vadd.s32 %v896, 176
    %v919 = vadd.s32 %v896, 184
    %v920 = vadd.s32 %v896, 192
    %v921 = vadd.s32 %v896, 200
    %v922 = vadd.s32 %v896, 208
    %v923 = vadd.s32 %v896, 216
    %v924 = vadd.s32 %v896, 224
    %v925 = vadd.s32 %v896, 232
    %v926 = vadd.s32 %v896, 240
    %v927 = vadd.s32 %v896, 248
    %v928 = vadd.s32 %v896, 256
    %v929 = vadd.s32 %v896, 264
    %v930 = vadd.s32 %v896, 272
    %v931 = vadd.s32 %v896, 280
    %v932 = vadd.s32 %v896, 288
    %v933 = vadd.s32 %v896, 296
    %v934 = vstv %s894
    %v935 = vadd.s32 %v934, %v896
    %v936 = vadd.s32 %v934, %v897
    %v937 = vadd.s32 %v934, %v898
    %v938 = vadd.s32 %v934, %v899
    %v939 = vadd.s32 %v934, %v900
    %v940 = vadd.s32 %v934, %v901
    %v941 = vadd.s32 %v934, %v902
    %v942 = vadd.s32 %v934, %v903
    %v943 = vadd.s32 %v934, %v904
    %v944 = vadd.s32 %v934, %v905
    %v945 = vadd.s32 %v934, %v906
    %v946 = vadd.s32 %v934, %v907
    %v947 = vadd.s32 %v934, %v908
    %v948 = vadd.s32 %v934, %v909
    %v949 = vadd.s32 %v934, %v910
    %v950 = vadd.s32 %v934, %v911
    %v951 = vadd.s32 %v934, %v912
    %v952 = vadd.s32 %v934, %v913
    %v953 = vadd.s32 %v934, %v914
    %v954 = vadd.s32 %v934, %v915
    %v955 = vadd.s32 %v934, %v916
    %v956 = vadd.s32 %v934, %v917
    %v957 = vadd.s32 %v934, %v918
    %v958 = vadd.s32 %v934, %v919
    %v959 = vadd.s32 %v934, %v920
    %v960 = vadd.s32 %v934, %v921
    %v961 = vadd.s32 %v934, %v922
    %v962 = vadd.s32 %v934, %v923
    %v963 = vadd.s32 %v934, %v924
    %v964 = vadd.s32 %v934, %v925
    %v965 = vadd.s32 %v934, %v926
    %v966 = vadd.s32 %v934, %v927
    %v967 = vadd.s32 %v934, %v928
    %v968 = vadd.s32 %v934, %v929
    %v969 = vadd.s32 %v934, %v930
    %v970 = vadd.s32 %v934, %v931
    %v971 = vadd.s32 %v934, %v932
    %v972 = vadd.s32 %v934, %v933
    %vm973 = vcmp.lt.s32.totalorder %v935, 300
    %vm974 = vcmp.lt.s32.totalorder %v936, 300
    %vm975 = vcmp.lt.s32.totalorder %v937, 300
    %vm976 = vcmp.lt.s32.totalorder %v938, 300
    %vm977 = vcmp.lt.s32.totalorder %v939, 300
    %vm978 = vcmp.lt.s32.totalorder %v940, 300
    %vm979 = vcmp.lt.s32.totalorder %v941, 300
    %vm980 = vcmp.lt.s32.totalorder %v942, 300
    %vm981 = vcmp.lt.s32.totalorder %v943, 300
    %vm982 = vcmp.lt.s32.totalorder %v944, 300
    %vm983 = vcmp.lt.s32.totalorder %v945, 300
    %vm984 = vcmp.lt.s32.totalorder %v946, 300
    %vm985 = vcmp.lt.s32.totalorder %v947, 300
    %vm986 = vcmp.lt.s32.totalorder %v948, 300
    %vm987 = vcmp.lt.s32.totalorder %v949, 300
    %vm988 = vcmp.lt.s32.totalorder %v950, 300
    %vm989 = vcmp.lt.s32.totalorder %v951, 300
    %vm990 = vcmp.lt.s32.totalorder %v952, 300
    %vm991 = vcmp.lt.s32.totalorder %v953, 300
    %vm992 = vcmp.lt.s32.totalorder %v954, 300
    %vm993 = vcmp.lt.s32.totalorder %v955, 300
    %vm994 = vcmp.lt.s32.totalorder %v956, 300
    %vm995 = vcmp.lt.s32.totalorder %v957, 300
    %vm996 = vcmp.lt.s32.totalorder %v958, 300
    %vm997 = vcmp.lt.s32.totalorder %v959, 300
    %vm998 = vcmp.lt.s32.totalorder %v960, 300
    %vm999 = vcmp.lt.s32.totalorder %v961, 300
    %vm1000 = vcmp.lt.s32.totalorder %v962, 300
    %vm1001 = vcmp.lt.s32.totalorder %v963, 300
    %vm1002 = vcmp.lt.s32.totalorder %v964, 300
    %vm1003 = vcmp.lt.s32.totalorder %v965, 300
    %vm1004 = vcmp.lt.s32.totalorder %v966, 300
    %vm1005 = vcmp.lt.s32.totalorder %v967, 300
    %vm1006 = vcmp.lt.s32.totalorder %v968, 300
    %vm1007 = vcmp.lt.s32.totalorder %v969, 300
    %vm1008 = vcmp.lt.s32.totalorder %v970, 300
    %vm1009 = vcmp.lt.s32.totalorder %v971, 300
    %vm1010 = vcmp.lt.s32.totalorder %v972, 300
    %vm1011 = vcmp.ge.s32.totalorder %v856, 0
    %vm1012 = vcmp.ge.s32.totalorder %v857, 0
    %vm1013 = vcmp.ge.s32.totalorder %v858, 0
    %vm1014 = vcmp.ge.s32.totalorder %v859, 0
    %vm1015 = vcmp.ge.s32.totalorder %v860, 0
    %vm1016 = vcmp.ge.s32.totalorder %v861, 0
    %vm1017 = vcmp.ge.s32.totalorder %v862, 0
    %vm1018 = vcmp.ge.s32.totalorder %v863, 0
    %vm1019 = vcmp.ge.s32.totalorder %v864, 0
    %vm1020 = vcmp.ge.s32.totalorder %v865, 0
    %vm1021 = vcmp.ge.s32.totalorder %v866, 0
    %vm1022 = vcmp.ge.s32.totalorder %v867, 0
    %vm1023 = vcmp.ge.s32.totalorder %v868, 0
    %vm1024 = vcmp.ge.s32.totalorder %v869, 0
    %vm1025 = vcmp.ge.s32.totalorder %v870, 0
    %vm1026 = vcmp.ge.s32.totalorder %v871, 0
    %vm1027 = vcmp.ge.s32.totalorder %v872, 0
    %vm1028 = vcmp.ge.s32.totalorder %v873, 0
    %vm1029 = vcmp.ge.s32.totalorder %v874, 0
    %vm1030 = vcmp.ge.s32.totalorder %v875, 0
    %vm1031 = vcmp.ge.s32.totalorder %v876, 0
    %vm1032 = vcmp.ge.s32.totalorder %v877, 0
    %vm1033 = vcmp.ge.s32.totalorder %v878, 0
    %vm1034 = vcmp.ge.s32.totalorder %v879, 0
    %vm1035 = vcmp.ge.s32.totalorder %v880, 0
    %vm1036 = vcmp.ge.s32.totalorder %v881, 0
    %vm1037 = vcmp.ge.s32.totalorder %v882, 0
    %vm1038 = vcmp.ge.s32.totalorder %v883, 0
    %vm1039 = vcmp.ge.s32.totalorder %v884, 0
    %vm1040 = vcmp.ge.s32.totalorder %v885, 0
    %vm1041 = vcmp.ge.s32.totalorder %v886, 0
    %vm1042 = vcmp.ge.s32.totalorder %v887, 0
    %vm1043 = vcmp.ge.s32.totalorder %v888, 0
    %vm1044 = vcmp.ge.s32.totalorder %v889, 0
    %vm1045 = vcmp.ge.s32.totalorder %v890, 0
    %vm1046 = vcmp.ge.s32.totalorder %v891, 0
    %vm1047 = vcmp.ge.s32.totalorder %v892, 0
    %vm1048 = vcmp.ge.s32.totalorder %v893, 0
    %vm1049 = vmand %vm973, %vm1011
    %vm1050 = vmand %vm974, %vm1012
    %vm1051 = vmand %vm975, %vm1013
    %vm1052 = vmand %vm976, %vm1014
    %vm1053 = vmand %vm977, %vm1015
    %vm1054 = vmand %vm978, %vm1016
    %vm1055 = vmand %vm979, %vm1017
    %vm1056 = vmand %vm980, %vm1018
    %vm1057 = vmand %vm981, %vm1019
    %vm1058 = vmand %vm982, %vm1020
    %vm1059 = vmand %vm983, %vm1021
    %vm1060 = vmand %vm984, %vm1022
    %vm1061 = vmand %vm985, %vm1023
    %vm1062 = vmand %vm986, %vm1024
    %vm1063 = vmand %vm987, %vm1025
    %vm1064 = vmand %vm988, %vm1026
    %vm1065 = vmand %vm989, %vm1027
    %vm1066 = vmand %vm990, %vm1028
    %vm1067 = vmand %vm991, %vm1029
    %vm1068 = vmand %vm992, %vm1030
    %vm1069 = vmand %vm993, %vm1031
    %vm1070 = vmand %vm994, %vm1032
    %vm1071 = vmand %vm995, %vm1033
    %vm1072 = vmand %vm996, %vm1034
    %vm1073 = vmand %vm997, %vm1035
    %vm1074 = vmand %vm998, %vm1036
    %vm1075 = vmand %vm999, %vm1037
    %vm1076 = vmand %vm1000, %vm1038
    %vm1077 = vmand %vm1001, %vm1039
    %vm1078 = vmand %vm1002, %vm1040
    %vm1079 = vmand %vm1003, %vm1041
    %vm1080 = vmand %vm1004, %vm1042
    %vm1081 = vmand %vm1005, %vm1043
    %vm1082 = vmand %vm1006, %vm1044
    %vm1083 = vmand %vm1007, %vm1045
    %vm1084 = vmand %vm1008, %vm1046
    %vm1085 = vmand %vm1009, %vm1047
    %vm1086 = vmand %vm1010, %vm1048
    %vm1087 = vcmask 64512
    %v1088 = vsel %vm1087, %v515, -inf
    %1089 = vmax.xlane.f32.xlu0 %v1088
    %v1090 = vpop.xlane.xlu0 %1089
    %v1091 = vsel %vm1087, %v518, -inf
    %1092 = vmax.xlane.f32.xlu0 %v1091
    %v1093 = vpop.xlane.xlu0 %1092
    %v1094 = vsel %vm1087, %v523, -inf
    %1095 = vmax.xlane.f32.xlu0 %v1094
    %v1096 = vpop.xlane.xlu0 %1095
    %v1097 = vsel %vm1087, %v526, -inf
    %1098 = vmax.xlane.f32.xlu0 %v1097
    %v1099 = vpop.xlane.xlu0 %1098
    %v1100 = vsel %vm1087, %v531, -inf
    %1101 = vmax.xlane.f32.xlu0 %v1100
    %v1102 = vpop.xlane.xlu0 %1101
    %v1103 = vsel %vm1087, %v534, -inf
    %1104 = vmax.xlane.f32.xlu0 %v1103
    %v1105 = vpop.xlane.xlu0 %1104
    %v1106 = vsel %vm1087, %v539, -inf
    %1107 = vmax.xlane.f32.xlu0 %v1106
    %v1108 = vpop.xlane.xlu0 %1107
    %v1109 = vsel %vm1087, %v542, -inf
    %1110 = vmax.xlane.f32.xlu0 %v1109
    %v1111 = vpop.xlane.xlu0 %1110
    %v1112 = vsel %vm1087, %v547, -inf
    %1113 = vmax.xlane.f32.xlu0 %v1112
    %v1114 = vpop.xlane.xlu0 %1113
    %v1115 = vsel %vm1087, %v550, -inf
    %1116 = vmax.xlane.f32.xlu0 %v1115
    %v1117 = vpop.xlane.xlu0 %1116
    %v1118 = vsel %vm1087, %v555, -inf
    %1119 = vmax.xlane.f32.xlu0 %v1118
    %v1120 = vpop.xlane.xlu0 %1119
    %v1121 = vsel %vm1087, %v558, -inf
    %1122 = vmax.xlane.f32.xlu0 %v1121
    %v1123 = vpop.xlane.xlu0 %1122
    %v1124 = vsel %vm1087, %v563, -inf
    %1125 = vmax.xlane.f32.xlu0 %v1124
    %v1126 = vpop.xlane.xlu0 %1125
    %v1127 = vsel %vm1087, %v566, -inf
    %1128 = vmax.xlane.f32.xlu0 %v1127
    %v1129 = vpop.xlane.xlu0 %1128
    %v1130 = vsel %vm1087, %v571, -inf
    %1131 = vmax.xlane.f32.xlu0 %v1130
    %v1132 = vpop.xlane.xlu0 %1131
    %v1133 = vsel %vm1087, %v574, -inf
    %1134 = vmax.xlane.f32.xlu0 %v1133
    %v1135 = vpop.xlane.xlu0 %1134
    %v1136 = vsel %vm1087, %v579, -inf
    %1137 = vmax.xlane.f32.xlu0 %v1136
    %v1138 = vpop.xlane.xlu0 %1137
    %v1139 = vsel %vm1087, %v582, -inf
    %1140 = vmax.xlane.f32.xlu0 %v1139
    %v1141 = vpop.xlane.xlu0 %1140
    %v1142 = vsel %vm1087, %v587, -inf
    %1143 = vmax.xlane.f32.xlu0 %v1142
    %v1144 = vpop.xlane.xlu0 %1143
    %v1145 = vsel %vm1087, %v590, -inf
    %1146 = vmax.xlane.f32.xlu0 %v1145
    %v1147 = vpop.xlane.xlu0 %1146
    %v1148 = vsel %vm1087, %v595, -inf
    %1149 = vmax.xlane.f32.xlu0 %v1148
    %v1150 = vpop.xlane.xlu0 %1149
    %v1151 = vsel %vm1087, %v598, -inf
    %1152 = vmax.xlane.f32.xlu0 %v1151
    %v1153 = vpop.xlane.xlu0 %1152
    %v1154 = vsel %vm1087, %v603, -inf
    %1155 = vmax.xlane.f32.xlu0 %v1154
    %v1156 = vpop.xlane.xlu0 %1155
    %v1157 = vsel %vm1087, %v606, -inf
    %1158 = vmax.xlane.f32.xlu0 %v1157
    %v1159 = vpop.xlane.xlu0 %1158
    %v1160 = vsel %vm1087, %v611, -inf
    %1161 = vmax.xlane.f32.xlu0 %v1160
    %v1162 = vpop.xlane.xlu0 %1161
    %v1163 = vsel %vm1087, %v614, -inf
    %1164 = vmax.xlane.f32.xlu0 %v1163
    %v1165 = vpop.xlane.xlu0 %1164
    %v1166 = vsel %vm1087, %v619, -inf
    %1167 = vmax.xlane.f32.xlu0 %v1166
    %v1168 = vpop.xlane.xlu0 %1167
    %v1169 = vsel %vm1087, %v622, -inf
    %1170 = vmax.xlane.f32.xlu0 %v1169
    %v1171 = vpop.xlane.xlu0 %1170
    %v1172 = vsel %vm1087, %v627, -inf
    %1173 = vmax.xlane.f32.xlu0 %v1172
    %v1174 = vpop.xlane.xlu0 %1173
    %v1175 = vsel %vm1087, %v630, -inf
    %1176 = vmax.xlane.f32.xlu0 %v1175
    %v1177 = vpop.xlane.xlu0 %1176
    %v1178 = vsel %vm1087, %v635, -inf
    %1179 = vmax.xlane.f32.xlu0 %v1178
    %v1180 = vpop.xlane.xlu0 %1179
    %v1181 = vsel %vm1087, %v638, -inf
    %1182 = vmax.xlane.f32.xlu0 %v1181
    %v1183 = vpop.xlane.xlu0 %1182
    %v1184 = vsel %vm1087, %v643, -inf
    %1185 = vmax.xlane.f32.xlu0 %v1184
    %v1186 = vpop.xlane.xlu0 %1185
    %v1187 = vsel %vm1087, %v646, -inf
    %1188 = vmax.xlane.f32.xlu0 %v1187
    %v1189 = vpop.xlane.xlu0 %1188
    %v1190 = vsel %vm1087, %v651, -inf
    %1191 = vmax.xlane.f32.xlu0 %v1190
    %v1192 = vpop.xlane.xlu0 %1191
    %v1193 = vsel %vm1087, %v654, -inf
    %1194 = vmax.xlane.f32.xlu0 %v1193
    %v1195 = vpop.xlane.xlu0 %1194
    %v1196 = vsel %vm1087, %v659, -inf
    %1197 = vmax.xlane.f32.xlu0 %v1196
    %v1198 = vpop.xlane.xlu0 %1197
    %v1199 = vsel %vm1087, %v662, -inf
    %1200 = vmax.xlane.f32.xlu0 %v1199
    %v1201 = vpop.xlane.xlu0 %1200
    %v1202 = vsub.f32 %v515, %v1090
    %v1203 = vsub.f32 %v518, %v1093
    %v1204 = vsub.f32 %v523, %v1096
    %v1205 = vsub.f32 %v526, %v1099
    %v1206 = vsub.f32 %v531, %v1102
    %v1207 = vsub.f32 %v534, %v1105
    %v1208 = vsub.f32 %v539, %v1108
    %v1209 = vsub.f32 %v542, %v1111
    %v1210 = vsub.f32 %v547, %v1114
    %v1211 = vsub.f32 %v550, %v1117
    %v1212 = vsub.f32 %v555, %v1120
    %v1213 = vsub.f32 %v558, %v1123
    %v1214 = vsub.f32 %v563, %v1126
    %v1215 = vsub.f32 %v566, %v1129
    %v1216 = vsub.f32 %v571, %v1132
    %v1217 = vsub.f32 %v574, %v1135
    %v1218 = vsub.f32 %v579, %v1138
    %v1219 = vsub.f32 %v582, %v1141
    %v1220 = vsub.f32 %v587, %v1144
    %v1221 = vsub.f32 %v590, %v1147
    %v1222 = vsub.f32 %v595, %v1150
    %v1223 = vsub.f32 %v598, %v1153
    %v1224 = vsub.f32 %v603, %v1156
    %v1225 = vsub.f32 %v606, %v1159
    %v1226 = vsub.f32 %v611, %v1162
    %v1227 = vsub.f32 %v614, %v1165
    %v1228 = vsub.f32 %v619, %v1168
    %v1229 = vsub.f32 %v622, %v1171
    %v1230 = vsub.f32 %v627, %v1174
    %v1231 = vsub.f32 %v630, %v1177
    %v1232 = vsub.f32 %v635, %v1180
    %v1233 = vsub.f32 %v638, %v1183
    %v1234 = vsub.f32 %v643, %v1186
    %v1235 = vsub.f32 %v646, %v1189
    %v1236 = vsub.f32 %v651, %v1192
    %v1237 = vsub.f32 %v654, %v1195
    %v1238 = vsub.f32 %v659, %v1198
    %v1239 = vsub.f32 %v662, %v1201
    %v1240 = vmul.f32 %v1202, 1.442695
    %v1241 = vpow.pop %v1240
    %v1242 = vmul.f32 %v1203, 1.442695
    %v1243 = vpow.pop %v1242
    %v1244 = vmul.f32 %v1204, 1.442695
    %v1245 = vpow.pop %v1244
    %v1246 = vmul.f32 %v1205, 1.442695
    %v1247 = vpow.pop %v1246
    %v1248 = vmul.f32 %v1206, 1.442695
    %v1249 = vpow.pop %v1248
    %v1250 = vmul.f32 %v1207, 1.442695
    %v1251 = vpow.pop %v1250
    %v1252 = vmul.f32 %v1208, 1.442695
    %v1253 = vpow.pop %v1252
    %v1254 = vmul.f32 %v1209, 1.442695
    %v1255 = vpow.pop %v1254
    %v1256 = vmul.f32 %v1210, 1.442695
    %v1257 = vpow.pop %v1256
    %v1258 = vmul.f32 %v1211, 1.442695
    %v1259 = vpow.pop %v1258
    %v1260 = vmul.f32 %v1212, 1.442695
    %v1261 = vpow.pop %v1260
    %v1262 = vmul.f32 %v1213, 1.442695
    %v1263 = vpow.pop %v1262
    %v1264 = vmul.f32 %v1214, 1.442695
    %v1265 = vpow.pop %v1264
    %v1266 = vmul.f32 %v1215, 1.442695
    %v1267 = vpow.pop %v1266
    %v1268 = vmul.f32 %v1216, 1.442695
    %v1269 = vpow.pop %v1268
    %v1270 = vmul.f32 %v1217, 1.442695
    %v1271 = vpow.pop %v1270
    %v1272 = vmul.f32 %v1218, 1.442695
    %v1273 = vpow.pop %v1272
    %v1274 = vmul.f32 %v1219, 1.442695
    %v1275 = vpow.pop %v1274
    %v1276 = vmul.f32 %v1220, 1.442695
    %v1277 = vpow.pop %v1276
    %v1278 = vmul.f32 %v1221, 1.442695
    %v1279 = vpow.pop %v1278
    %v1280 = vmul.f32 %v1222, 1.442695
    %v1281 = vpow.pop %v1280
    %v1282 = vmul.f32 %v1223, 1.442695
    %v1283 = vpow.pop %v1282
    %v1284 = vmul.f32 %v1224, 1.442695
    %v1285 = vpow.pop %v1284
    %v1286 = vmul.f32 %v1225, 1.442695
    %v1287 = vpow.pop %v1286
    %v1288 = vmul.f32 %v1226, 1.442695
    %v1289 = vpow.pop %v1288
    %v1290 = vmul.f32 %v1227, 1.442695
    %v1291 = vpow.pop %v1290
    %v1292 = vmul.f32 %v1228, 1.442695
    %v1293 = vpow.pop %v1292
    %v1294 = vmul.f32 %v1229, 1.442695
    %v1295 = vpow.pop %v1294
    %v1296 = vmul.f32 %v1230, 1.442695
    %v1297 = vpow.pop %v1296
    %v1298 = vmul.f32 %v1231, 1.442695
    %v1299 = vpow.pop %v1298
    %v1300 = vmul.f32 %v1232, 1.442695
    %v1301 = vpow.pop %v1300
    %v1302 = vmul.f32 %v1233, 1.442695
    %v1303 = vpow.pop %v1302
    %v1304 = vmul.f32 %v1234, 1.442695
    %v1305 = vpow.pop %v1304
    %v1306 = vmul.f32 %v1235, 1.442695
    %v1307 = vpow.pop %v1306
    %v1308 = vmul.f32 %v1236, 1.442695
    %v1309 = vpow.pop %v1308
    %v1310 = vmul.f32 %v1237, 1.442695
    %v1311 = vpow.pop %v1310
    %v1312 = vmul.f32 %v1238, 1.442695
    %v1313 = vpow.pop %v1312
    %v1314 = vmul.f32 %v1239, 1.442695
    %v1315 = vpow.pop %v1314
    %v1316 = vsel %vm1087, %v1241, 0.0
    %1317 = vadd.xlane.f32.xlu0 %v1316
    %v1318 = vpop.xlane.xlu0 %1317
    %v1319 = vsel %vm1087, %v1243, 0.0
    %1320 = vadd.xlane.f32.xlu0 %v1319
    %v1321 = vpop.xlane.xlu0 %1320
    %v1322 = vsel %vm1087, %v1245, 0.0
    %1323 = vadd.xlane.f32.xlu0 %v1322
    %v1324 = vpop.xlane.xlu0 %1323
    %v1325 = vsel %vm1087, %v1247, 0.0
    %1326 = vadd.xlane.f32.xlu0 %v1325
    %v1327 = vpop.xlane.xlu0 %1326
    %v1328 = vsel %vm1087, %v1249, 0.0
    %1329 = vadd.xlane.f32.xlu0 %v1328
    %v1330 = vpop.xlane.xlu0 %1329
    %v1331 = vsel %vm1087, %v1251, 0.0
    %1332 = vadd.xlane.f32.xlu0 %v1331
    %v1333 = vpop.xlane.xlu0 %1332
    %v1334 = vsel %vm1087, %v1253, 0.0
    %1335 = vadd.xlane.f32.xlu0 %v1334
    %v1336 = vpop.xlane.xlu0 %1335
    %v1337 = vsel %vm1087, %v1255, 0.0
    %1338 = vadd.xlane.f32.xlu0 %v1337
    %v1339 = vpop.xlane.xlu0 %1338
    %v1340 = vsel %vm1087, %v1257, 0.0
    %1341 = vadd.xlane.f32.xlu0 %v1340
    %v1342 = vpop.xlane.xlu0 %1341
    %v1343 = vsel %vm1087, %v1259, 0.0
    %1344 = vadd.xlane.f32.xlu0 %v1343
    %v1345 = vpop.xlane.xlu0 %1344
    %v1346 = vsel %vm1087, %v1261, 0.0
    %1347 = vadd.xlane.f32.xlu0 %v1346
    %v1348 = vpop.xlane.xlu0 %1347
    %v1349 = vsel %vm1087, %v1263, 0.0
    %1350 = vadd.xlane.f32.xlu0 %v1349
    %v1351 = vpop.xlane.xlu0 %1350
    %v1352 = vsel %vm1087, %v1265, 0.0
    %1353 = vadd.xlane.f32.xlu0 %v1352
    %v1354 = vpop.xlane.xlu0 %1353
    %v1355 = vsel %vm1087, %v1267, 0.0
    %1356 = vadd.xlane.f32.xlu0 %v1355
    %v1357 = vpop.xlane.xlu0 %1356
    %v1358 = vsel %vm1087, %v1269, 0.0
    %1359 = vadd.xlane.f32.xlu0 %v1358
    %v1360 = vpop.xlane.xlu0 %1359
    %v1361 = vsel %vm1087, %v1271, 0.0
    %1362 = vadd.xlane.f32.xlu0 %v1361
    %v1363 = vpop.xlane.xlu0 %1362
    %v1364 = vsel %vm1087, %v1273, 0.0
    %1365 = vadd.xlane.f32.xlu0 %v1364
    %v1366 = vpop.xlane.xlu0 %1365
    %v1367 = vsel %vm1087, %v1275, 0.0
    %1368 = vadd.xlane.f32.xlu0 %v1367
    %v1369 = vpop.xlane.xlu0 %1368
    %v1370 = vsel %vm1087, %v1277, 0.0
    %1371 = vadd.xlane.f32.xlu0 %v1370
    %v1372 = vpop.xlane.xlu0 %1371
    %v1373 = vsel %vm1087, %v1279, 0.0
    %1374 = vadd.xlane.f32.xlu0 %v1373
    %v1375 = vpop.xlane.xlu0 %1374
    %v1376 = vsel %vm1087, %v1281, 0.0
    %1377 = vadd.xlane.f32.xlu0 %v1376
    %v1378 = vpop.xlane.xlu0 %1377
    %v1379 = vsel %vm1087, %v1283, 0.0
    %1380 = vadd.xlane.f32.xlu0 %v1379
    %v1381 = vpop.xlane.xlu0 %1380
    %v1382 = vsel %vm1087, %v1285, 0.0
    %1383 = vadd.xlane.f32.xlu0 %v1382
    %v1384 = vpop.xlane.xlu0 %1383
    %v1385 = vsel %vm1087, %v1287, 0.0
    %1386 = vadd.xlane.f32.xlu0 %v1385
    %v1387 = vpop.xlane.xlu0 %1386
    %v1388 = vsel %vm1087, %v1289, 0.0
    %1389 = vadd.xlane.f32.xlu0 %v1388
    %v1390 = vpop.xlane.xlu0 %1389
    %v1391 = vsel %vm1087, %v1291, 0.0
    %1392 = vadd.xlane.f32.xlu0 %v1391
    %v1393 = vpop.xlane.xlu0 %1392
    %v1394 = vsel %vm1087, %v1293, 0.0
    %1395 = vadd.xlane.f32.xlu0 %v1394
    %v1396 = vpop.xlane.xlu0 %1395
    %v1397 = vsel %vm1087, %v1295, 0.0
    %1398 = vadd.xlane.f32.xlu0 %v1397
    %v1399 = vpop.xlane.xlu0 %1398
    %v1400 = vsel %vm1087, %v1297, 0.0
    %1401 = vadd.xlane.f32.xlu0 %v1400
    %v1402 = vpop.xlane.xlu0 %1401
    %v1403 = vsel %vm1087, %v1299, 0.0
    %1404 = vadd.xlane.f32.xlu0 %v1403
    %v1405 = vpop.xlane.xlu0 %1404
    %v1406 = vsel %vm1087, %v1301, 0.0
    %1407 = vadd.xlane.f32.xlu0 %v1406
    %v1408 = vpop.xlane.xlu0 %1407
    %v1409 = vsel %vm1087, %v1303, 0.0
    %1410 = vadd.xlane.f32.xlu0 %v1409
    %v1411 = vpop.xlane.xlu0 %1410
    %v1412 = vsel %vm1087, %v1305, 0.0
    %1413 = vadd.xlane.f32.xlu0 %v1412
    %v1414 = vpop.xlane.xlu0 %1413
    %v1415 = vsel %vm1087, %v1307, 0.0
    %1416 = vadd.xlane.f32.xlu0 %v1415
    %v1417 = vpop.xlane.xlu0 %1416
    %v1418 = vsel %vm1087, %v1309, 0.0
    %1419 = vadd.xlane.f32.xlu0 %v1418
    %v1420 = vpop.xlane.xlu0 %1419
    %v1421 = vsel %vm1087, %v1311, 0.0
    %1422 = vadd.xlane.f32.xlu0 %v1421
    %v1423 = vpop.xlane.xlu0 %1422
    %v1424 = vsel %vm1087, %v1313, 0.0
    %1425 = vadd.xlane.f32.xlu0 %v1424
    %v1426 = vpop.xlane.xlu0 %1425
    %v1427 = vsel %vm1087, %v1315, 0.0
    %1428 = vadd.xlane.f32.xlu0 %v1427
    %v1429 = vpop.xlane.xlu0 %1428
    %v1430 = vlog2.pop %v1318
    %v1431 = vmul.f32 %v1430, 0.6931472
    %v1432 = vlog2.pop %v1321
    %v1433 = vmul.f32 %v1432, 0.6931472
    %v1434 = vlog2.pop %v1324
    %v1435 = vmul.f32 %v1434, 0.6931472
    %v1436 = vlog2.pop %v1327
    %v1437 = vmul.f32 %v1436, 0.6931472
    %v1438 = vlog2.pop %v1330
    %v1439 = vmul.f32 %v1438, 0.6931472
    %v1440 = vlog2.pop %v1333
    %v1441 = vmul.f32 %v1440, 0.6931472
    %v1442 = vlog2.pop %v1336
    %v1443 = vmul.f32 %v1442, 0.6931472
    %v1444 = vlog2.pop %v1339
    %v1445 = vmul.f32 %v1444, 0.6931472
    %v1446 = vlog2.pop %v1342
    %v1447 = vmul.f32 %v1446, 0.6931472
    %v1448 = vlog2.pop %v1345
    %v1449 = vmul.f32 %v1448, 0.6931472
    %v1450 = vlog2.pop %v1348
    %v1451 = vmul.f32 %v1450, 0.6931472
    %v1452 = vlog2.pop %v1351
    %v1453 = vmul.f32 %v1452, 0.6931472
    %v1454 = vlog2.pop %v1354
    %v1455 = vmul.f32 %v1454, 0.6931472
    %v1456 = vlog2.pop %v1357
    %v1457 = vmul.f32 %v1456, 0.6931472
    %v1458 = vlog2.pop %v1360
    %v1459 = vmul.f32 %v1458, 0.6931472
    %v1460 = vlog2.pop %v1363
    %v1461 = vmul.f32 %v1460, 0.6931472
    %v1462 = vlog2.pop %v1366
    %v1463 = vmul.f32 %v1462, 0.6931472
    %v1464 = vlog2.pop %v1369
    %v1465 = vmul.f32 %v1464, 0.6931472
    %v1466 = vlog2.pop %v1372
    %v1467 = vmul.f32 %v1466, 0.6931472
    %v1468 = vlog2.pop %v1375
    %v1469 = vmul.f32 %v1468, 0.6931472
    %v1470 = vlog2.pop %v1378
    %v1471 = vmul.f32 %v1470, 0.6931472
    %v1472 = vlog2.pop %v1381
    %v1473 = vmul.f32 %v1472, 0.6931472
    %v1474 = vlog2.pop %v1384
    %v1475 = vmul.f32 %v1474, 0.6931472
    %v1476 = vlog2.pop %v1387
    %v1477 = vmul.f32 %v1476, 0.6931472
    %v1478 = vlog2.pop %v1390
    %v1479 = vmul.f32 %v1478, 0.6931472
    %v1480 = vlog2.pop %v1393
    %v1481 = vmul.f32 %v1480, 0.6931472
    %v1482 = vlog2.pop %v1396
    %v1483 = vmul.f32 %v1482, 0.6931472
    %v1484 = vlog2.pop %v1399
    %v1485 = vmul.f32 %v1484, 0.6931472
    %v1486 = vlog2.pop %v1402
    %v1487 = vmul.f32 %v1486, 0.6931472
    %v1488 = vlog2.pop %v1405
    %v1489 = vmul.f32 %v1488, 0.6931472
    %v1490 = vlog2.pop %v1408
    %v1491 = vmul.f32 %v1490, 0.6931472
    %v1492 = vlog2.pop %v1411
    %v1493 = vmul.f32 %v1492, 0.6931472
    %v1494 = vlog2.pop %v1414
    %v1495 = vmul.f32 %v1494, 0.6931472
    %v1496 = vlog2.pop %v1417
    %v1497 = vmul.f32 %v1496, 0.6931472
    %v1498 = vlog2.pop %v1420
    %v1499 = vmul.f32 %v1498, 0.6931472
    %v1500 = vlog2.pop %v1423
    %v1501 = vmul.f32 %v1500, 0.6931472
    %v1502 = vlog2.pop %v1426
    %v1503 = vmul.f32 %v1502, 0.6931472
    %v1504 = vlog2.pop %v1429
    %v1505 = vmul.f32 %v1504, 0.6931472
    %v1506 = vadd.f32 %v1431, %v1090
    %v1507 = vadd.f32 %v1433, %v1093
    %v1508 = vadd.f32 %v1435, %v1096
    %v1509 = vadd.f32 %v1437, %v1099
    %v1510 = vadd.f32 %v1439, %v1102
    %v1511 = vadd.f32 %v1441, %v1105
    %v1512 = vadd.f32 %v1443, %v1108
    %v1513 = vadd.f32 %v1445, %v1111
    %v1514 = vadd.f32 %v1447, %v1114
    %v1515 = vadd.f32 %v1449, %v1117
    %v1516 = vadd.f32 %v1451, %v1120
    %v1517 = vadd.f32 %v1453, %v1123
    %v1518 = vadd.f32 %v1455, %v1126
    %v1519 = vadd.f32 %v1457, %v1129
    %v1520 = vadd.f32 %v1459, %v1132
    %v1521 = vadd.f32 %v1461, %v1135
    %v1522 = vadd.f32 %v1463, %v1138
    %v1523 = vadd.f32 %v1465, %v1141
    %v1524 = vadd.f32 %v1467, %v1144
    %v1525 = vadd.f32 %v1469, %v1147
    %v1526 = vadd.f32 %v1471, %v1150
    %v1527 = vadd.f32 %v1473, %v1153
    %v1528 = vadd.f32 %v1475, %v1156
    %v1529 = vadd.f32 %v1477, %v1159
    %v1530 = vadd.f32 %v1479, %v1162
    %v1531 = vadd.f32 %v1481, %v1165
    %v1532 = vadd.f32 %v1483, %v1168
    %v1533 = vadd.f32 %v1485, %v1171
    %v1534 = vadd.f32 %v1487, %v1174
    %v1535 = vadd.f32 %v1489, %v1177
    %v1536 = vadd.f32 %v1491, %v1180
    %v1537 = vadd.f32 %v1493, %v1183
    %v1538 = vadd.f32 %v1495, %v1186
    %v1539 = vadd.f32 %v1497, %v1189
    %v1540 = vadd.f32 %v1499, %v1192
    %v1541 = vadd.f32 %v1501, %v1195
    %v1542 = vadd.f32 %v1503, %v1198
    %v1543 = vadd.f32 %v1505, %v1201
    %v1544 = vlaneseq
    %v1545 = vand.u32 %v1544, 127
    %1546 = vset.pattern.permute.xlu0 0
    %1547 = vperm.xlu0 %1546, %v856
    %v1548 = vpop.permute.xlu0 %1547
    %1549 = vset.pattern.permute.xlu0 0
    %1550 = vperm.xlu0 %1549, %v857
    %v1551 = vpop.permute.xlu0 %1550
    %1552 = vset.pattern.permute.xlu0 0
    %1553 = vperm.xlu0 %1552, %v858
    %v1554 = vpop.permute.xlu0 %1553
    %1555 = vset.pattern.permute.xlu0 0
    %1556 = vperm.xlu0 %1555, %v859
    %v1557 = vpop.permute.xlu0 %1556
    %1558 = vset.pattern.permute.xlu0 0
    %1559 = vperm.xlu0 %1558, %v860
    %v1560 = vpop.permute.xlu0 %1559
    %1561 = vset.pattern.permute.xlu0 0
    %1562 = vperm.xlu0 %1561, %v861
    %v1563 = vpop.permute.xlu0 %1562
    %1564 = vset.pattern.permute.xlu0 0
    %1565 = vperm.xlu0 %1564, %v862
    %v1566 = vpop.permute.xlu0 %1565
    %1567 = vset.pattern.permute.xlu0 0
    %1568 = vperm.xlu0 %1567, %v863
    %v1569 = vpop.permute.xlu0 %1568
    %1570 = vset.pattern.permute.xlu0 0
    %1571 = vperm.xlu0 %1570, %v864
    %v1572 = vpop.permute.xlu0 %1571
    %1573 = vset.pattern.permute.xlu0 0
    %1574 = vperm.xlu0 %1573, %v865
    %v1575 = vpop.permute.xlu0 %1574
    %1576 = vset.pattern.permute.xlu0 0
    %1577 = vperm.xlu0 %1576, %v866
    %v1578 = vpop.permute.xlu0 %1577
    %1579 = vset.pattern.permute.xlu0 0
    %1580 = vperm.xlu0 %1579, %v867
    %v1581 = vpop.permute.xlu0 %1580
    %1582 = vset.pattern.permute.xlu0 0
    %1583 = vperm.xlu0 %1582, %v868
    %v1584 = vpop.permute.xlu0 %1583
    %1585 = vset.pattern.permute.xlu0 0
    %1586 = vperm.xlu0 %1585, %v869
    %v1587 = vpop.permute.xlu0 %1586
    %1588 = vset.pattern.permute.xlu0 0
    %1589 = vperm.xlu0 %1588, %v870
    %v1590 = vpop.permute.xlu0 %1589
    %1591 = vset.pattern.permute.xlu0 0
    %1592 = vperm.xlu0 %1591, %v871
    %v1593 = vpop.permute.xlu0 %1592
    %1594 = vset.pattern.permute.xlu0 0
    %1595 = vperm.xlu0 %1594, %v872
    %v1596 = vpop.permute.xlu0 %1595
    %1597 = vset.pattern.permute.xlu0 0
    %1598 = vperm.xlu0 %1597, %v873
    %v1599 = vpop.permute.xlu0 %1598
    %1600 = vset.pattern.permute.xlu0 0
    %1601 = vperm.xlu0 %1600, %v874
    %v1602 = vpop.permute.xlu0 %1601
    %1603 = vset.pattern.permute.xlu0 0
    %1604 = vperm.xlu0 %1603, %v875
    %v1605 = vpop.permute.xlu0 %1604
    %1606 = vset.pattern.permute.xlu0 0
    %1607 = vperm.xlu0 %1606, %v876
    %v1608 = vpop.permute.xlu0 %1607
    %1609 = vset.pattern.permute.xlu0 0
    %1610 = vperm.xlu0 %1609, %v877
    %v1611 = vpop.permute.xlu0 %1610
    %1612 = vset.pattern.permute.xlu0 0
    %1613 = vperm.xlu0 %1612, %v878
    %v1614 = vpop.permute.xlu0 %1613
    %1615 = vset.pattern.permute.xlu0 0
    %1616 = vperm.xlu0 %1615, %v879
    %v1617 = vpop.permute.xlu0 %1616
    %1618 = vset.pattern.permute.xlu0 0
    %1619 = vperm.xlu0 %1618, %v880
    %v1620 = vpop.permute.xlu0 %1619
    %1621 = vset.pattern.permute.xlu0 0
    %1622 = vperm.xlu0 %1621, %v881
    %v1623 = vpop.permute.xlu0 %1622
    %1624 = vset.pattern.permute.xlu0 0
    %1625 = vperm.xlu0 %1624, %v882
    %v1626 = vpop.permute.xlu0 %1625
    %1627 = vset.pattern.permute.xlu0 0
    %1628 = vperm.xlu0 %1627, %v883
    %v1629 = vpop.permute.xlu0 %1628
    %1630 = vset.pattern.permute.xlu0 0
    %1631 = vperm.xlu0 %1630, %v884
    %v1632 = vpop.permute.xlu0 %1631
    %1633 = vset.pattern.permute.xlu0 0
    %1634 = vperm.xlu0 %1633, %v885
    %v1635 = vpop.permute.xlu0 %1634
    %1636 = vset.pattern.permute.xlu0 0
    %1637 = vperm.xlu0 %1636, %v886
    %v1638 = vpop.permute.xlu0 %1637
    %1639 = vset.pattern.permute.xlu0 0
    %1640 = vperm.xlu0 %1639, %v887
    %v1641 = vpop.permute.xlu0 %1640
    %1642 = vset.pattern.permute.xlu0 0
    %1643 = vperm.xlu0 %1642, %v888
    %v1644 = vpop.permute.xlu0 %1643
    %1645 = vset.pattern.permute.xlu0 0
    %1646 = vperm.xlu0 %1645, %v889
    %v1647 = vpop.permute.xlu0 %1646
    %1648 = vset.pattern.permute.xlu0 0
    %1649 = vperm.xlu0 %1648, %v890
    %v1650 = vpop.permute.xlu0 %1649
    %1651 = vset.pattern.permute.xlu0 0
    %1652 = vperm.xlu0 %1651, %v891
    %v1653 = vpop.permute.xlu0 %1652
    %1654 = vset.pattern.permute.xlu0 0
    %1655 = vperm.xlu0 %1654, %v892
    %v1656 = vpop.permute.xlu0 %1655
    %1657 = vset.pattern.permute.xlu0 0
    %1658 = vperm.xlu0 %1657, %v893
    %v1659 = vpop.permute.xlu0 %1658
    %vm1660 = vcmp.eq.s32.totalorder %v1545, %v1548
    %vm1661 = vcmp.eq.s32.totalorder %v1545, %v1551
    %vm1662 = vcmp.eq.s32.totalorder %v1545, %v1554
    %vm1663 = vcmp.eq.s32.totalorder %v1545, %v1557
    %vm1664 = vcmp.eq.s32.totalorder %v1545, %v1560
    %vm1665 = vcmp.eq.s32.totalorder %v1545, %v1563
    %vm1666 = vcmp.eq.s32.totalorder %v1545, %v1566
    %vm1667 = vcmp.eq.s32.totalorder %v1545, %v1569
    %vm1668 = vcmp.eq.s32.totalorder %v1545, %v1572
    %vm1669 = vcmp.eq.s32.totalorder %v1545, %v1575
    %vm1670 = vcmp.eq.s32.totalorder %v1545, %v1578
    %vm1671 = vcmp.eq.s32.totalorder %v1545, %v1581
    %vm1672 = vcmp.eq.s32.totalorder %v1545, %v1584
    %vm1673 = vcmp.eq.s32.totalorder %v1545, %v1587
    %vm1674 = vcmp.eq.s32.totalorder %v1545, %v1590
    %vm1675 = vcmp.eq.s32.totalorder %v1545, %v1593
    %vm1676 = vcmp.eq.s32.totalorder %v1545, %v1596
    %vm1677 = vcmp.eq.s32.totalorder %v1545, %v1599
    %vm1678 = vcmp.eq.s32.totalorder %v1545, %v1602
    %vm1679 = vcmp.eq.s32.totalorder %v1545, %v1605
    %vm1680 = vcmp.eq.s32.totalorder %v1545, %v1608
    %vm1681 = vcmp.eq.s32.totalorder %v1545, %v1611
    %vm1682 = vcmp.eq.s32.totalorder %v1545, %v1614
    %vm1683 = vcmp.eq.s32.totalorder %v1545, %v1617
    %vm1684 = vcmp.eq.s32.totalorder %v1545, %v1620
    %vm1685 = vcmp.eq.s32.totalorder %v1545, %v1623
    %vm1686 = vcmp.eq.s32.totalorder %v1545, %v1626
    %vm1687 = vcmp.eq.s32.totalorder %v1545, %v1629
    %vm1688 = vcmp.eq.s32.totalorder %v1545, %v1632
    %vm1689 = vcmp.eq.s32.totalorder %v1545, %v1635
    %vm1690 = vcmp.eq.s32.totalorder %v1545, %v1638
    %vm1691 = vcmp.eq.s32.totalorder %v1545, %v1641
    %vm1692 = vcmp.eq.s32.totalorder %v1545, %v1644
    %vm1693 = vcmp.eq.s32.totalorder %v1545, %v1647
    %vm1694 = vcmp.eq.s32.totalorder %v1545, %v1650
    %vm1695 = vcmp.eq.s32.totalorder %v1545, %v1653
    %vm1696 = vcmp.eq.s32.totalorder %v1545, %v1656
    %vm1697 = vcmp.eq.s32.totalorder %v1545, %v1659
    %v1698 = vsel %vm1660, %v515, 0.0
    %v1699 = vsel %vm1661, %v518, 0.0
    %v1700 = vsel %vm1662, %v523, 0.0
    %v1701 = vsel %vm1663, %v526, 0.0
    %v1702 = vsel %vm1664, %v531, 0.0
    %v1703 = vsel %vm1665, %v534, 0.0
    %v1704 = vsel %vm1666, %v539, 0.0
    %v1705 = vsel %vm1667, %v542, 0.0
    %v1706 = vsel %vm1668, %v547, 0.0
    %v1707 = vsel %vm1669, %v550, 0.0
    %v1708 = vsel %vm1670, %v555, 0.0
    %v1709 = vsel %vm1671, %v558, 0.0
    %v1710 = vsel %vm1672, %v563, 0.0
    %v1711 = vsel %vm1673, %v566, 0.0
    %v1712 = vsel %vm1674, %v571, 0.0
    %v1713 = vsel %vm1675, %v574, 0.0
    %v1714 = vsel %vm1676, %v579, 0.0
    %v1715 = vsel %vm1677, %v582, 0.0
    %v1716 = vsel %vm1678, %v587, 0.0
    %v1717 = vsel %vm1679, %v590, 0.0
    %v1718 = vsel %vm1680, %v595, 0.0
    %v1719 = vsel %vm1681, %v598, 0.0
    %v1720 = vsel %vm1682, %v603, 0.0
    %v1721 = vsel %vm1683, %v606, 0.0
    %v1722 = vsel %vm1684, %v611, 0.0
    %v1723 = vsel %vm1685, %v614, 0.0
    %v1724 = vsel %vm1686, %v619, 0.0
    %v1725 = vsel %vm1687, %v622, 0.0
    %v1726 = vsel %vm1688, %v627, 0.0
    %v1727 = vsel %vm1689, %v630, 0.0
    %v1728 = vsel %vm1690, %v635, 0.0
    %v1729 = vsel %vm1691, %v638, 0.0
    %v1730 = vsel %vm1692, %v643, 0.0
    %v1731 = vsel %vm1693, %v646, 0.0
    %v1732 = vsel %vm1694, %v651, 0.0
    %v1733 = vsel %vm1695, %v654, 0.0
    %v1734 = vsel %vm1696, %v659, 0.0
    %v1735 = vsel %vm1697, %v662, 0.0
    %v1736 = vsel %vm1087, %v1698, 0.0
    %1737 = vadd.xlane.f32.xlu0 %v1736
    %v1738 = vpop.xlane.xlu0 %1737
    %v1739 = vsel %vm1087, %v1699, 0.0
    %1740 = vadd.xlane.f32.xlu0 %v1739
    %v1741 = vpop.xlane.xlu0 %1740
    %v1742 = vsel %vm1087, %v1700, 0.0
    %1743 = vadd.xlane.f32.xlu0 %v1742
    %v1744 = vpop.xlane.xlu0 %1743
    %v1745 = vsel %vm1087, %v1701, 0.0
    %1746 = vadd.xlane.f32.xlu0 %v1745
    %v1747 = vpop.xlane.xlu0 %1746
    %v1748 = vsel %vm1087, %v1702, 0.0
    %1749 = vadd.xlane.f32.xlu0 %v1748
    %v1750 = vpop.xlane.xlu0 %1749
    %v1751 = vsel %vm1087, %v1703, 0.0
    %1752 = vadd.xlane.f32.xlu0 %v1751
    %v1753 = vpop.xlane.xlu0 %1752
    %v1754 = vsel %vm1087, %v1704, 0.0
    %1755 = vadd.xlane.f32.xlu0 %v1754
    %v1756 = vpop.xlane.xlu0 %1755
    %v1757 = vsel %vm1087, %v1705, 0.0
    %1758 = vadd.xlane.f32.xlu0 %v1757
    %v1759 = vpop.xlane.xlu0 %1758
    %v1760 = vsel %vm1087, %v1706, 0.0
    %1761 = vadd.xlane.f32.xlu0 %v1760
    %v1762 = vpop.xlane.xlu0 %1761
    %v1763 = vsel %vm1087, %v1707, 0.0
    %1764 = vadd.xlane.f32.xlu0 %v1763
    %v1765 = vpop.xlane.xlu0 %1764
    %v1766 = vsel %vm1087, %v1708, 0.0
    %1767 = vadd.xlane.f32.xlu0 %v1766
    %v1768 = vpop.xlane.xlu0 %1767
    %v1769 = vsel %vm1087, %v1709, 0.0
    %1770 = vadd.xlane.f32.xlu0 %v1769
    %v1771 = vpop.xlane.xlu0 %1770
    %v1772 = vsel %vm1087, %v1710, 0.0
    %1773 = vadd.xlane.f32.xlu0 %v1772
    %v1774 = vpop.xlane.xlu0 %1773
    %v1775 = vsel %vm1087, %v1711, 0.0
    %1776 = vadd.xlane.f32.xlu0 %v1775
    %v1777 = vpop.xlane.xlu0 %1776
    %v1778 = vsel %vm1087, %v1712, 0.0
    %1779 = vadd.xlane.f32.xlu0 %v1778
    %v1780 = vpop.xlane.xlu0 %1779
    %v1781 = vsel %vm1087, %v1713, 0.0
    %1782 = vadd.xlane.f32.xlu0 %v1781
    %v1783 = vpop.xlane.xlu0 %1782
    %v1784 = vsel %vm1087, %v1714, 0.0
    %1785 = vadd.xlane.f32.xlu0 %v1784
    %v1786 = vpop.xlane.xlu0 %1785
    %v1787 = vsel %vm1087, %v1715, 0.0
    %1788 = vadd.xlane.f32.xlu0 %v1787
    %v1789 = vpop.xlane.xlu0 %1788
    %v1790 = vsel %vm1087, %v1716, 0.0
    %1791 = vadd.xlane.f32.xlu0 %v1790
    %v1792 = vpop.xlane.xlu0 %1791
    %v1793 = vsel %vm1087, %v1717, 0.0
    %1794 = vadd.xlane.f32.xlu0 %v1793
    %v1795 = vpop.xlane.xlu0 %1794
    %v1796 = vsel %vm1087, %v1718, 0.0
    %1797 = vadd.xlane.f32.xlu0 %v1796
    %v1798 = vpop.xlane.xlu0 %1797
    %v1799 = vsel %vm1087, %v1719, 0.0
    %1800 = vadd.xlane.f32.xlu0 %v1799
    %v1801 = vpop.xlane.xlu0 %1800
    %v1802 = vsel %vm1087, %v1720, 0.0
    %1803 = vadd.xlane.f32.xlu0 %v1802
    %v1804 = vpop.xlane.xlu0 %1803
    %v1805 = vsel %vm1087, %v1721, 0.0
    %1806 = vadd.xlane.f32.xlu0 %v1805
    %v1807 = vpop.xlane.xlu0 %1806
    %v1808 = vsel %vm1087, %v1722, 0.0
    %1809 = vadd.xlane.f32.xlu0 %v1808
    %v1810 = vpop.xlane.xlu0 %1809
    %v1811 = vsel %vm1087, %v1723, 0.0
    %1812 = vadd.xlane.f32.xlu0 %v1811
    %v1813 = vpop.xlane.xlu0 %1812
    %v1814 = vsel %vm1087, %v1724, 0.0
    %1815 = vadd.xlane.f32.xlu0 %v1814
    %v1816 = vpop.xlane.xlu0 %1815
    %v1817 = vsel %vm1087, %v1725, 0.0
    %1818 = vadd.xlane.f32.xlu0 %v1817
    %v1819 = vpop.xlane.xlu0 %1818
    %v1820 = vsel %vm1087, %v1726, 0.0
    %1821 = vadd.xlane.f32.xlu0 %v1820
    %v1822 = vpop.xlane.xlu0 %1821
    %v1823 = vsel %vm1087, %v1727, 0.0
    %1824 = vadd.xlane.f32.xlu0 %v1823
    %v1825 = vpop.xlane.xlu0 %1824
    %v1826 = vsel %vm1087, %v1728, 0.0
    %1827 = vadd.xlane.f32.xlu0 %v1826
    %v1828 = vpop.xlane.xlu0 %1827
    %v1829 = vsel %vm1087, %v1729, 0.0
    %1830 = vadd.xlane.f32.xlu0 %v1829
    %v1831 = vpop.xlane.xlu0 %1830
    %v1832 = vsel %vm1087, %v1730, 0.0
    %1833 = vadd.xlane.f32.xlu0 %v1832
    %v1834 = vpop.xlane.xlu0 %1833
    %v1835 = vsel %vm1087, %v1731, 0.0
    %1836 = vadd.xlane.f32.xlu0 %v1835
    %v1837 = vpop.xlane.xlu0 %1836
    %v1838 = vsel %vm1087, %v1732, 0.0
    %1839 = vadd.xlane.f32.xlu0 %v1838
    %v1840 = vpop.xlane.xlu0 %1839
    %v1841 = vsel %vm1087, %v1733, 0.0
    %1842 = vadd.xlane.f32.xlu0 %v1841
    %v1843 = vpop.xlane.xlu0 %1842
    %v1844 = vsel %vm1087, %v1734, 0.0
    %1845 = vadd.xlane.f32.xlu0 %v1844
    %v1846 = vpop.xlane.xlu0 %1845
    %v1847 = vsel %vm1087, %v1735, 0.0
    %1848 = vadd.xlane.f32.xlu0 %v1847
    %v1849 = vpop.xlane.xlu0 %1848
    %v1850 = vsub.f32 %v1506, %v1738
    %v1851 = vsub.f32 %v1507, %v1741
    %v1852 = vsub.f32 %v1508, %v1744
    %v1853 = vsub.f32 %v1509, %v1747
    %v1854 = vsub.f32 %v1510, %v1750
    %v1855 = vsub.f32 %v1511, %v1753
    %v1856 = vsub.f32 %v1512, %v1756
    %v1857 = vsub.f32 %v1513, %v1759
    %v1858 = vsub.f32 %v1514, %v1762
    %v1859 = vsub.f32 %v1515, %v1765
    %v1860 = vsub.f32 %v1516, %v1768
    %v1861 = vsub.f32 %v1517, %v1771
    %v1862 = vsub.f32 %v1518, %v1774
    %v1863 = vsub.f32 %v1519, %v1777
    %v1864 = vsub.f32 %v1520, %v1780
    %v1865 = vsub.f32 %v1521, %v1783
    %v1866 = vsub.f32 %v1522, %v1786
    %v1867 = vsub.f32 %v1523, %v1789
    %v1868 = vsub.f32 %v1524, %v1792
    %v1869 = vsub.f32 %v1525, %v1795
    %v1870 = vsub.f32 %v1526, %v1798
    %v1871 = vsub.f32 %v1527, %v1801
    %v1872 = vsub.f32 %v1528, %v1804
    %v1873 = vsub.f32 %v1529, %v1807
    %v1874 = vsub.f32 %v1530, %v1810
    %v1875 = vsub.f32 %v1531, %v1813
    %v1876 = vsub.f32 %v1532, %v1816
    %v1877 = vsub.f32 %v1533, %v1819
    %v1878 = vsub.f32 %v1534, %v1822
    %v1879 = vsub.f32 %v1535, %v1825
    %v1880 = vsub.f32 %v1536, %v1828
    %v1881 = vsub.f32 %v1537, %v1831
    %v1882 = vsub.f32 %v1538, %v1834
    %v1883 = vsub.f32 %v1539, %v1837
    %v1884 = vsub.f32 %v1540, %v1840
    %v1885 = vsub.f32 %v1541, %v1843
    %v1886 = vsub.f32 %v1542, %v1846
    %v1887 = vsub.f32 %v1543, %v1849
    %v1888 = vsel %vm1049, %v1850, 0.0
    %v1889 = vsel %vm1050, %v1851, 0.0
    %v1890 = vsel %vm1051, %v1852, 0.0
    %v1891 = vsel %vm1052, %v1853, 0.0
    %v1892 = vsel %vm1053, %v1854, 0.0
    %v1893 = vsel %vm1054, %v1855, 0.0
    %v1894 = vsel %vm1055, %v1856, 0.0
    %v1895 = vsel %vm1056, %v1857, 0.0
    %v1896 = vsel %vm1057, %v1858, 0.0
    %v1897 = vsel %vm1058, %v1859, 0.0
    %v1898 = vsel %vm1059, %v1860, 0.0
    %v1899 = vsel %vm1060, %v1861, 0.0
    %v1900 = vsel %vm1061, %v1862, 0.0
    %v1901 = vsel %vm1062, %v1863, 0.0
    %v1902 = vsel %vm1063, %v1864, 0.0
    %v1903 = vsel %vm1064, %v1865, 0.0
    %v1904 = vsel %vm1065, %v1866, 0.0
    %v1905 = vsel %vm1066, %v1867, 0.0
    %v1906 = vsel %vm1067, %v1868, 0.0
    %v1907 = vsel %vm1068, %v1869, 0.0
    %v1908 = vsel %vm1069, %v1870, 0.0
    %v1909 = vsel %vm1070, %v1871, 0.0
    %v1910 = vsel %vm1071, %v1872, 0.0
    %v1911 = vsel %vm1072, %v1873, 0.0
    %v1912 = vsel %vm1073, %v1874, 0.0
    %v1913 = vsel %vm1074, %v1875, 0.0
    %v1914 = vsel %vm1075, %v1876, 0.0
    %v1915 = vsel %vm1076, %v1877, 0.0
    %v1916 = vsel %vm1077, %v1878, 0.0
    %v1917 = vsel %vm1078, %v1879, 0.0
    %v1918 = vsel %vm1079, %v1880, 0.0
    %v1919 = vsel %vm1080, %v1881, 0.0
    %v1920 = vsel %vm1081, %v1882, 0.0
    %v1921 = vsel %vm1082, %v1883, 0.0
    %v1922 = vsel %vm1083, %v1884, 0.0
    %v1923 = vsel %vm1084, %v1885, 0.0
    %v1924 = vsel %vm1085, %v1886, 0.0
    %v1925 = vsel %vm1086, %v1887, 0.0
    %vm1926 = vcmask 7168
    %v1927 = vsel %vm1926, %v1888, 0.0
    %v1928 = vsel %vm1926, %v1889, 0.0
    %v1929 = vadd.f32 %v1927, %v1928
    %v1930 = vsel %vm1926, %v1890, 0.0
    %v1931 = vadd.f32 %v1929, %v1930
    %v1932 = vsel %vm1926, %v1891, 0.0
    %v1933 = vadd.f32 %v1931, %v1932
    %v1934 = vsel %vm1926, %v1892, 0.0
    %v1935 = vadd.f32 %v1933, %v1934
    %v1936 = vsel %vm1926, %v1893, 0.0
    %v1937 = vadd.f32 %v1935, %v1936
    %v1938 = vsel %vm1926, %v1894, 0.0
    %v1939 = vadd.f32 %v1937, %v1938
    %v1940 = vsel %vm1926, %v1895, 0.0
    %v1941 = vadd.f32 %v1939, %v1940
    %v1942 = vsel %vm1926, %v1896, 0.0
    %v1943 = vadd.f32 %v1941, %v1942
    %v1944 = vsel %vm1926, %v1897, 0.0
    %v1945 = vadd.f32 %v1943, %v1944
    %v1946 = vsel %vm1926, %v1898, 0.0
    %v1947 = vadd.f32 %v1945, %v1946
    %v1948 = vsel %vm1926, %v1899, 0.0
    %v1949 = vadd.f32 %v1947, %v1948
    %v1950 = vsel %vm1926, %v1900, 0.0
    %v1951 = vadd.f32 %v1949, %v1950
    %v1952 = vsel %vm1926, %v1901, 0.0
    %v1953 = vadd.f32 %v1951, %v1952
    %v1954 = vsel %vm1926, %v1902, 0.0
    %v1955 = vadd.f32 %v1953, %v1954
    %v1956 = vsel %vm1926, %v1903, 0.0
    %v1957 = vadd.f32 %v1955, %v1956
    %v1958 = vsel %vm1926, %v1904, 0.0
    %v1959 = vadd.f32 %v1957, %v1958
    %v1960 = vsel %vm1926, %v1905, 0.0
    %v1961 = vadd.f32 %v1959, %v1960
    %v1962 = vsel %vm1926, %v1906, 0.0
    %v1963 = vadd.f32 %v1961, %v1962
    %v1964 = vsel %vm1926, %v1907, 0.0
    %v1965 = vadd.f32 %v1963, %v1964
    %v1966 = vsel %vm1926, %v1908, 0.0
    %v1967 = vadd.f32 %v1965, %v1966
    %v1968 = vsel %vm1926, %v1909, 0.0
    %v1969 = vadd.f32 %v1967, %v1968
    %v1970 = vsel %vm1926, %v1910, 0.0
    %v1971 = vadd.f32 %v1969, %v1970
    %v1972 = vsel %vm1926, %v1911, 0.0
    %v1973 = vadd.f32 %v1971, %v1972
    %v1974 = vsel %vm1926, %v1912, 0.0
    %v1975 = vadd.f32 %v1973, %v1974
    %v1976 = vsel %vm1926, %v1913, 0.0
    %v1977 = vadd.f32 %v1975, %v1976
    %v1978 = vsel %vm1926, %v1914, 0.0
    %v1979 = vadd.f32 %v1977, %v1978
    %v1980 = vsel %vm1926, %v1915, 0.0
    %v1981 = vadd.f32 %v1979, %v1980
    %v1982 = vsel %vm1926, %v1916, 0.0
    %v1983 = vadd.f32 %v1981, %v1982
    %v1984 = vsel %vm1926, %v1917, 0.0
    %v1985 = vadd.f32 %v1983, %v1984
    %v1986 = vsel %vm1926, %v1918, 0.0
    %v1987 = vadd.f32 %v1985, %v1986
    %v1988 = vsel %vm1926, %v1919, 0.0
    %v1989 = vadd.f32 %v1987, %v1988
    %v1990 = vsel %vm1926, %v1920, 0.0
    %v1991 = vadd.f32 %v1989, %v1990
    %v1992 = vsel %vm1926, %v1921, 0.0
    %v1993 = vadd.f32 %v1991, %v1992
    %v1994 = vsel %vm1926, %v1922, 0.0
    %v1995 = vadd.f32 %v1993, %v1994
    %v1996 = vsel %vm1926, %v1923, 0.0
    %v1997 = vadd.f32 %v1995, %v1996
    %v1998 = vsel %vm1926, %v1924, 0.0
    %v1999 = vadd.f32 %v1997, %v1998
    %v2000 = vsel %vm1926, %v1925, 0.0
    %v2001 = vadd.f32 %v1999, %v2000
    %2002 = vadd.xlane.f32.xlu0 %v2001
    %v2003 = vpop.xlane.xlu0 %2002
    %v2004 = vrot.slane %v2003, 4
    %v2005 = vadd.f32 %v2003, %v2004
    %v2006 = vrot.slane %v2005, 2
    %v2007 = vadd.f32 %v2005, %v2006
    %v2008 = vrot.slane %v2007, 1
    %v2009 = vadd.f32 %v2007, %v2008
    %s2010 = vtos %v2009
    %v2011 = vsel %vm1049, 1, 0
    %v2012 = vsel %vm1050, 1, 0
    %v2013 = vsel %vm1051, 1, 0
    %v2014 = vsel %vm1052, 1, 0
    %v2015 = vsel %vm1053, 1, 0
    %v2016 = vsel %vm1054, 1, 0
    %v2017 = vsel %vm1055, 1, 0
    %v2018 = vsel %vm1056, 1, 0
    %v2019 = vsel %vm1057, 1, 0
    %v2020 = vsel %vm1058, 1, 0
    %v2021 = vsel %vm1059, 1, 0
    %v2022 = vsel %vm1060, 1, 0
    %v2023 = vsel %vm1061, 1, 0
    %v2024 = vsel %vm1062, 1, 0
    %v2025 = vsel %vm1063, 1, 0
    %v2026 = vsel %vm1064, 1, 0
    %v2027 = vsel %vm1065, 1, 0
    %v2028 = vsel %vm1066, 1, 0
    %v2029 = vsel %vm1067, 1, 0
    %v2030 = vsel %vm1068, 1, 0
    %v2031 = vsel %vm1069, 1, 0
    %v2032 = vsel %vm1070, 1, 0
    %v2033 = vsel %vm1071, 1, 0
    %v2034 = vsel %vm1072, 1, 0
    %v2035 = vsel %vm1073, 1, 0
    %v2036 = vsel %vm1074, 1, 0
    %v2037 = vsel %vm1075, 1, 0
    %v2038 = vsel %vm1076, 1, 0
    %v2039 = vsel %vm1077, 1, 0
    %v2040 = vsel %vm1078, 1, 0
    %v2041 = vsel %vm1079, 1, 0
    %v2042 = vsel %vm1080, 1, 0
    %v2043 = vsel %vm1081, 1, 0
    %v2044 = vsel %vm1082, 1, 0
    %v2045 = vsel %vm1083, 1, 0
    %v2046 = vsel %vm1084, 1, 0
    %v2047 = vsel %vm1085, 1, 0
    %v2048 = vsel %vm1086, 1, 0
    %v2049 = vcvt.s32.f32 %v2011
    %v2050 = vcvt.s32.f32 %v2012
    %v2051 = vcvt.s32.f32 %v2013
    %v2052 = vcvt.s32.f32 %v2014
    %v2053 = vcvt.s32.f32 %v2015
    %v2054 = vcvt.s32.f32 %v2016
    %v2055 = vcvt.s32.f32 %v2017
    %v2056 = vcvt.s32.f32 %v2018
    %v2057 = vcvt.s32.f32 %v2019
    %v2058 = vcvt.s32.f32 %v2020
    %v2059 = vcvt.s32.f32 %v2021
    %v2060 = vcvt.s32.f32 %v2022
    %v2061 = vcvt.s32.f32 %v2023
    %v2062 = vcvt.s32.f32 %v2024
    %v2063 = vcvt.s32.f32 %v2025
    %v2064 = vcvt.s32.f32 %v2026
    %v2065 = vcvt.s32.f32 %v2027
    %v2066 = vcvt.s32.f32 %v2028
    %v2067 = vcvt.s32.f32 %v2029
    %v2068 = vcvt.s32.f32 %v2030
    %v2069 = vcvt.s32.f32 %v2031
    %v2070 = vcvt.s32.f32 %v2032
    %v2071 = vcvt.s32.f32 %v2033
    %v2072 = vcvt.s32.f32 %v2034
    %v2073 = vcvt.s32.f32 %v2035
    %v2074 = vcvt.s32.f32 %v2036
    %v2075 = vcvt.s32.f32 %v2037
    %v2076 = vcvt.s32.f32 %v2038
    %v2077 = vcvt.s32.f32 %v2039
    %v2078 = vcvt.s32.f32 %v2040
    %v2079 = vcvt.s32.f32 %v2041
    %v2080 = vcvt.s32.f32 %v2042
    %v2081 = vcvt.s32.f32 %v2043
    %v2082 = vcvt.s32.f32 %v2044
    %v2083 = vcvt.s32.f32 %v2045
    %v2084 = vcvt.s32.f32 %v2046
    %v2085 = vcvt.s32.f32 %v2047
    %v2086 = vcvt.s32.f32 %v2048
    %v2087 = vsel %vm1926, %v2049, 0.0
    %v2088 = vsel %vm1926, %v2050, 0.0
    %v2089 = vadd.f32 %v2087, %v2088
    %v2090 = vsel %vm1926, %v2051, 0.0
    %v2091 = vadd.f32 %v2089, %v2090
    %v2092 = vsel %vm1926, %v2052, 0.0
    %v2093 = vadd.f32 %v2091, %v2092
    %v2094 = vsel %vm1926, %v2053, 0.0
    %v2095 = vadd.f32 %v2093, %v2094
    %v2096 = vsel %vm1926, %v2054, 0.0
    %v2097 = vadd.f32 %v2095, %v2096
    %v2098 = vsel %vm1926, %v2055, 0.0
    %v2099 = vadd.f32 %v2097, %v2098
    %v2100 = vsel %vm1926, %v2056, 0.0
    %v2101 = vadd.f32 %v2099, %v2100
    %v2102 = vsel %vm1926, %v2057, 0.0
    %v2103 = vadd.f32 %v2101, %v2102
    %v2104 = vsel %vm1926, %v2058, 0.0
    %v2105 = vadd.f32 %v2103, %v2104
    %v2106 = vsel %vm1926, %v2059, 0.0
    %v2107 = vadd.f32 %v2105, %v2106
    %v2108 = vsel %vm1926, %v2060, 0.0
    %v2109 = vadd.f32 %v2107, %v2108
    %v2110 = vsel %vm1926, %v2061, 0.0
    %v2111 = vadd.f32 %v2109, %v2110
    %v2112 = vsel %vm1926, %v2062, 0.0
    %v2113 = vadd.f32 %v2111, %v2112
    %v2114 = vsel %vm1926, %v2063, 0.0
    %v2115 = vadd.f32 %v2113, %v2114
    %v2116 = vsel %vm1926, %v2064, 0.0
    %v2117 = vadd.f32 %v2115, %v2116
    %v2118 = vsel %vm1926, %v2065, 0.0
    %v2119 = vadd.f32 %v2117, %v2118
    %v2120 = vsel %vm1926, %v2066, 0.0
    %v2121 = vadd.f32 %v2119, %v2120
    %v2122 = vsel %vm1926, %v2067, 0.0
    %v2123 = vadd.f32 %v2121, %v2122
    %v2124 = vsel %vm1926, %v2068, 0.0
    %v2125 = vadd.f32 %v2123, %v2124
    %v2126 = vsel %vm1926, %v2069, 0.0
    %v2127 = vadd.f32 %v2125, %v2126
    %v2128 = vsel %vm1926, %v2070, 0.0
    %v2129 = vadd.f32 %v2127, %v2128
    %v2130 = vsel %vm1926, %v2071, 0.0
    %v2131 = vadd.f32 %v2129, %v2130
    %v2132 = vsel %vm1926, %v2072, 0.0
    %v2133 = vadd.f32 %v2131, %v2132
    %v2134 = vsel %vm1926, %v2073, 0.0
    %v2135 = vadd.f32 %v2133, %v2134
    %v2136 = vsel %vm1926, %v2074, 0.0
    %v2137 = vadd.f32 %v2135, %v2136
    %v2138 = vsel %vm1926, %v2075, 0.0
    %v2139 = vadd.f32 %v2137, %v2138
    %v2140 = vsel %vm1926, %v2076, 0.0
    %v2141 = vadd.f32 %v2139, %v2140
    %v2142 = vsel %vm1926, %v2077, 0.0
    %v2143 = vadd.f32 %v2141, %v2142
    %v2144 = vsel %vm1926, %v2078, 0.0
    %v2145 = vadd.f32 %v2143, %v2144
    %v2146 = vsel %vm1926, %v2079, 0.0
    %v2147 = vadd.f32 %v2145, %v2146
    %v2148 = vsel %vm1926, %v2080, 0.0
    %v2149 = vadd.f32 %v2147, %v2148
    %v2150 = vsel %vm1926, %v2081, 0.0
    %v2151 = vadd.f32 %v2149, %v2150
    %v2152 = vsel %vm1926, %v2082, 0.0
    %v2153 = vadd.f32 %v2151, %v2152
    %v2154 = vsel %vm1926, %v2083, 0.0
    %v2155 = vadd.f32 %v2153, %v2154
    %v2156 = vsel %vm1926, %v2084, 0.0
    %v2157 = vadd.f32 %v2155, %v2156
    %v2158 = vsel %vm1926, %v2085, 0.0
    %v2159 = vadd.f32 %v2157, %v2158
    %v2160 = vsel %vm1926, %v2086, 0.0
    %v2161 = vadd.f32 %v2159, %v2160
    %2162 = vadd.xlane.f32.xlu0 %v2161
    %v2163 = vpop.xlane.xlu0 %2162
    %v2164 = vrot.slane %v2163, 4
    %v2165 = vadd.f32 %v2163, %v2164
    %v2166 = vrot.slane %v2165, 2
    %v2167 = vadd.f32 %v2165, %v2166
    %v2168 = vrot.slane %v2167, 1
    %v2169 = vadd.f32 %v2167, %v2168
    %s2170 = vtos %v2169
    %vm2171 = vcmp.eq.s32.totalorder %v896, 0
    %vm2172 = vcmp.eq.s32.totalorder %v896, 1
    %v2173 = vstv %s2170
    %v2174 = vsel %vm2172, %v2173, 0.0
    %v2175 = vstv %s2010
    %v2176 = vsel %vm2171, %v2175, %v2174
    %2177 = vst [vmem:[#allocation2] sm:$0xff] %v2176
    // Predicated region
    $region26: #{tpu_custom_call.1} parent=1 // pred_check
      _
    $region27: #{tpu_custom_call.1} parent=1 // pred_check_branch
      %2179 = sbr.rel (0) target = $region29
    $region28: #{tpu_custom_call.1} parent=1 // pred_region
      _
    $region29: #{tpu_custom_call.1} parent=1 // pred_fallthru
      _
    // Predicated region
    $region30: #{tpu_custom_call.1} parent=1 // pred_check
      _
    $region31: #{tpu_custom_call.1} parent=1 // pred_check_branch
      %2181 = sbr.rel (0) target = $region33
    $region32: #{tpu_custom_call.1} parent=1 // pred_region
      %s2183 = ssub.s32 128, 128
      %2184 = vsyncadd [#allocation3], %s2183
      %s2186 = sshll.u32 [#allocation2], 4
      %s2187 = int_to_ptr.vmem [resolvable:$true] %s2186
      %2189 = dma.vmem_to_hbm [thread:$0]  %s2187, 128, %s7, [#allocation3]
    $region33: #{tpu_custom_call.1} parent=1 // pred_fallthru
      _
    // Predicated region
    $region34: #{tpu_custom_call.1} parent=1 // pred_check
      _
    $region35: #{tpu_custom_call.1} parent=1 // pred_check_branch
      %2191 = sbr.rel (0) target = $region37
    $region36: #{tpu_custom_call.1} parent=1 // pred_region
      _
    $region37: #{tpu_custom_call.1} parent=1 // pred_fallthru
      _
    // Predicated region
    $region38: #{tpu_custom_call.1} parent=1 // pred_check
      _
    $region39: #{tpu_custom_call.1} parent=1 // pred_check_branch
      %2193 = sbr.rel (0) target = $region41
    $region40: #{tpu_custom_call.1} parent=1 // pred_region
      %2194 = dma.done [#allocation3], 128
    $region41: #{tpu_custom_call.1} parent=1 // pred_fallthru
      _
    %2195 = vsyncpa [#allocation3], 1

</llo_original>
